<compile_context>
chip_gen: v7x
topology: tpu7x:2x2x1
jax: 0.10.0
libtpu: 0.0.40
codegen_flags: <defaults>
</compile_context>

<pallas_src>
import jax
import jax.numpy as jnp
from jax.experimental import pallas as pl
from jax.experimental.pallas import tpu as pltpu


def _round_up(x, m):
    return ((x + m - 1) // m) * m


def _tree_sum(vals):
    """Log-depth pairwise sum: keeps the MXU dots independent (no serial acc chain)."""
    while len(vals) > 1:
        nxt = [vals[k] + vals[k + 1] for k in range(0, len(vals) - 1, 2)]
        if len(vals) % 2:
            nxt.append(vals[-1])
        vals = nxt
    return vals[0]


def _make_fused_kernel(kernel_type, H, W, LW):
    """conv(3x3,pad=1) -> relu -> maxpool(3x3,s1,p1) -> flatten -> fc, one fused kernel.

    Only Python ints / a string are closed over; all array values are created inside the
    kernel body.
    """

    def kernel(x_ref, w_ref, b_ref, conv_ref, relu_ref, pool_ref, fc_ref, hal_ref):
        # ---- zero-padded input staged in a single 128-lane VMEM slab.
        #      Only the halo is zeroed (top/bottom row, column 0, column W+1);
        #      columns >= W+2 are never read by any slice below.
        zrow = jnp.zeros((1, LW), jnp.float32)
        zcol = jnp.zeros((H, 1), jnp.float32)
        hal_ref[0:1, :] = zrow
        hal_ref[H + 1:H + 2, :] = zrow
        hal_ref[1:1 + H, 0:1] = zcol
        hal_ref[1:1 + H, W + 1:W + 2] = zcol
        hal_ref[1:1 + H, 1:1 + W] = x_ref[...]
        hal = hal_ref[...]                      # (H+2, LW); padded image at [:, 0:W+2]

        # ---- separable 3x3 cross-correlation (PyTorch Conv2d semantics, zero pad=1)
        if kernel_type == "vertical":           # rows [1,1,1]^T x cols [1,0,-1]
            s = hal[0:H, :] + hal[1:H + 1, :] + hal[2:H + 2, :]      # row (sublane) pass
            conv = s[:, 0:W] - s[:, 2:2 + W]                         # col (lane) pass -> (H, W)
        else:                                   # horizontal: rows [1,0,-1]^T x cols [1,1,1]
            t = hal[:, 0:W] + hal[:, 1:1 + W] + hal[:, 2:2 + W]      # col (lane) pass
            conv = t[0:H, :] - t[2:H + 2, :]                         # row (sublane) pass -> (H, W)
        conv_ref[...] = conv

        # ---- ReLU
        relu = jnp.maximum(conv, 0.0)
        relu_ref[...] = relu

        # ---- MaxPool2d(3, stride=1, padding=1).  ReLU >= 0, so the zero halo already in
        #      hal_ref is equivalent to the pool's implicit -inf padding; reuse hal_ref
        #      (dead after the conv pass) instead of a second halo scratch.
        hal_ref[1:1 + H, 1:1 + W] = relu
        rp = hal_ref[...]
        rowmax = jnp.maximum(jnp.maximum(rp[0:H, :], rp[1:H + 1, :]), rp[2:H + 2, :])
        pool = jnp.maximum(jnp.maximum(rowmax[:, 0:W], rowmax[:, 1:1 + W]),
                           rowmax[:, 2:2 + W])                       # (H, W)
        pool_ref[...] = pool

        # ---- fused FC: flatten(pool) @ W^T + b, weight pre-laid-out as (H, W, 128).
        #      H *independent* (1,W)@(W,128) MXU dots (no serial acc+=dot / FIFO-pop chain),
        #      reduced with a log-depth register tree; bias added once at the end.
        # TODO(synk): a single K=H*W MXU contraction would need an in-kernel (H,W)->(1,H*W)
        # sublane->lane relayout that Mosaic does not reliably support; independent dots +
        # one reduction is the sanctioned fallback and removes the serialization.
        partials = [
            jnp.dot(pool[i:i + 1, :], w_ref[i], preferred_element_type=jnp.float32)
            for i in range(H)
        ]
        fc_ref[...] = _tree_sum(partials) + b_ref[...]

    return kernel


class Q1ModelPallas:
    """Pallas TPU port of Q1Model.forward: conv -> relu -> maxpool -> flatten -> fc."""

    NUM_CLASSES = 100

    def __init__(self, data_num_channels, data_width, data_height, kernel_type, key):
        # forward() reshapes the input to (1, 1, H, W), so only 1 channel is meaningful.
        assert data_num_channels == 1
        if kernel_type not in ("vertical", "horizontal"):
            raise ValueError(kernel_type)
        self.H = int(data_height)
        self.W = int(data_width)
        self.kernel_type = kernel_type

        H, W = self.H, self.W
        F = H * W * data_num_channels
        NC = self.NUM_CLASSES
        NP = _round_up(NC, 128)            # lane-aligned FC output width (100 -> 128)
        LW = _round_up(W + 2, 128)         # 128-lane halo/compute slab (was 256 before)

        # nn.Linear(F, 100)-style parameters.
        # TODO(synk): torch's default kaiming-uniform Linear init is replaced by a
        # deterministic jax.random.uniform stand-in with the same bound.
        k_w, k_b = jax.random.split(key)
        bound = 1.0 / (float(F) ** 0.5)
        self.fc_weight = jax.random.uniform(
            k_w, (NC, F), jnp.float32, minval=-bound, maxval=bound)
        self.fc_bias = jax.random.uniform(
            k_b, (NC,), jnp.float32, minval=-bound, maxval=bound)

        # Hoisted FC weight layout (once, in __init__): transpose, pad N 100->128,
        # reshape to (H, W, 128).  W is deliberately NOT padded to 128 (keeps the per-call
        # weight DMA at H*W*128*4 bytes).
        w_t = jnp.zeros((F, NP), jnp.float32).at[:, :NC].set(self.fc_weight.T)
        self._w3 = w_t.reshape(H, W, NP)
        self._b2 = jnp.zeros((1, NP), jnp.float32).at[0, :NC].set(self.fc_bias)

        # Single fused kernel, one block (H=W=16 is tiny).
        # TODO(synk): for large images, add a row-tiled "parallel" grid axis (halo via
        # index_map) and stream weight row-slabs so the resident weight fits v7x's 64 MiB
        # VMEM and both TensorCores are used.
        fused = pl.pallas_call(
            _make_fused_kernel(kernel_type, H, W, LW),
            out_shape=(
                jax.ShapeDtypeStruct((H, W), jnp.float32),    # conv
                jax.ShapeDtypeStruct((H, W), jnp.float32),    # relu
                jax.ShapeDtypeStruct((H, W), jnp.float32),    # pool
                jax.ShapeDtypeStruct((1, NP), jnp.float32),   # fc (lane-padded to 128)
            ),
            grid=(1,),
            in_specs=[
                pl.BlockSpec((H, W), lambda i: (0, 0)),
                pl.BlockSpec((H, W, NP), lambda i: (0, 0, 0)),
                pl.BlockSpec((1, NP), lambda i: (0, 0)),
            ],
            out_specs=(
                pl.BlockSpec((H, W), lambda i: (0, 0)),
                pl.BlockSpec((H, W), lambda i: (0, 0)),
                pl.BlockSpec((H, W), lambda i: (0, 0)),
                pl.BlockSpec((1, NP), lambda i: (0, 0)),
            ),
            scratch_shapes=[
                pltpu.VMEM((H + 2, LW), jnp.float32),   # shared conv/pool halo slab
            ],
        )

        def fwd(x, w3, b2):
            conv, relu, pool, fc_p = fused(x.astype(jnp.float32), w3, b2)
            # only the FC output needs a wrapper-side crop (128 -> 100 classes)
            return fc_p[:, :NC], conv, relu, pool

        self._forward = jax.jit(fwd)

    def __call__(self, x):
        assert x.shape == (self.H, self.W)
        fc_out, conv_out, relu_out, pool_out = self._forward(x, self._w3, self._b2)
        # matches PyTorch's (fc(vectorizer(y)), altered_images)
        return fc_out, [conv_out, relu_out, pool_out]


if __name__ == "__main__":
    key = jax.random.PRNGKey(0)
    k_x, k_p1, k_p2 = jax.random.split(key, 3)
    H = W = 16
    x = jax.random.normal(k_x, (H, W), jnp.float32)

    for kernel_type, k_p in (("vertical", k_p1), ("horizontal", k_p2)):
        model = Q1ModelPallas(1, W, H, kernel_type, k_p)
        fc_out, altered = model(x)
        jax.block_until_ready(fc_out)
        for a in altered:
            jax.block_until_ready(a)

        # pure-JAX reference of the PyTorch forward pass for a correctness cross-check
        if kernel_type == "vertical":
            kern = jnp.array([[1., 0., -1.], [1., 0., -1.], [1., 0., -1.]], jnp.float32)
        else:
            kern = jnp.array([[1., 1., 1.], [0., 0., 0.], [-1., -1., -1.]], jnp.float32)
        x4 = x[None, None]                                    # NCHW (1, 1, H, W)
        conv_ref = jax.lax.conv_general_dilated(
            x4, kern[None, None], (1, 1), ((1, 1), (1, 1)))
        relu_ref = jnp.maximum(conv_ref, 0.0)
        pool_ref = jax.lax.reduce_window(
            relu_ref, -jnp.inf, jax.lax.max,
            (1, 1, 3, 3), (1, 1, 1, 1), ((0, 0), (0, 0), (1, 1), (1, 1)))
        fc_ref = pool_ref.reshape(1, -1) @ model.fc_weight.T + model.fc_bias[None, :]

        assert jnp.allclose(altered[0], conv_ref[0, 0], atol=1e-4, rtol=1e-4), kernel_type
        assert jnp.allclose(altered[1], relu_ref[0, 0], atol=1e-4, rtol=1e-4), kernel_type
        assert jnp.allclose(altered[2], pool_ref[0, 0], atol=1e-4, rtol=1e-4), kernel_type
        assert jnp.allclose(fc_out, fc_ref, atol=1e-4, rtol=1e-4), kernel_type

    print("KERNEL_OK")
</pallas_src>

<mosaic_0001>
module attributes {stable_mosaic.version = 11 : i64} {
  func.func @kernel(%arg0: i32, %arg1: memref<16x16xf32, #tpu.memory_space<vmem>>, %arg2: memref<16x16x128xf32, #tpu.memory_space<vmem>>, %arg3: memref<1x128xf32, #tpu.memory_space<vmem>>, %arg4: memref<16x16xf32, #tpu.memory_space<vmem>>, %arg5: memref<16x16xf32, #tpu.memory_space<vmem>>, %arg6: memref<16x16xf32, #tpu.memory_space<vmem>>, %arg7: memref<1x128xf32, #tpu.memory_space<vmem>>, %arg8: memref<18x128xf32, #tpu.memory_space<vmem>>) attributes {dimension_semantics = [#tpu.dimension_semantics<arbitrary>], iteration_bounds = array<i64: 1>, scalar_prefetch = 0 : i64, scratch_operands = 1 : i64, tpu.core_type = #tpu.core_type<tc>, window_params = [{pipeline_mode = #tpu.pipeline_mode<synchronous>, transform_indices = @transform_0, window_bounds = array<i64: 16, 16>}, {pipeline_mode = #tpu.pipeline_mode<synchronous>, transform_indices = @transform_1, window_bounds = array<i64: 16, 16, 128>}, {pipeline_mode = #tpu.pipeline_mode<synchronous>, transform_indices = @transform_2, window_bounds = array<i64: 1, 128>}, {pipeline_mode = #tpu.pipeline_mode<synchronous>, transform_indices = @transform_3, window_bounds = array<i64: 16, 16>}, {pipeline_mode = #tpu.pipeline_mode<synchronous>, transform_indices = @transform_4, window_bounds = array<i64: 16, 16>}, {pipeline_mode = #tpu.pipeline_mode<synchronous>, transform_indices = @transform_5, window_bounds = array<i64: 16, 16>}, {pipeline_mode = #tpu.pipeline_mode<synchronous>, transform_indices = @transform_6, window_bounds = array<i64: 1, 128>}]} {
    %cst = arith.constant 0.000000e+00 : f32
    %0 = vector.broadcast %cst : f32 to vector<1x128xf32>
    %cst_0 = arith.constant 0.000000e+00 : f32
    %1 = vector.broadcast %cst_0 : f32 to vector<16x1xf32>
    %c0 = arith.constant 0 : index
    %c0_1 = arith.constant 0 : index
    %2 = vector.load %arg8[%c0, %c0_1] : memref<18x128xf32, #tpu.memory_space<vmem>>, vector<1x128xf32>
    tpu.vector_store %arg8[%c0, %c0_1], %0 {strides = array<i32>} : memref<18x128xf32, #tpu.memory_space<vmem>>, vector<1x128xf32>,
    %c17 = arith.constant 17 : index
    %c0_2 = arith.constant 0 : index
    %3 = vector.load %arg8[%c17, %c0_2] : memref<18x128xf32, #tpu.memory_space<vmem>>, vector<1x128xf32>
    tpu.vector_store %arg8[%c17, %c0_2], %0 {strides = array<i32>} : memref<18x128xf32, #tpu.memory_space<vmem>>, vector<1x128xf32>,
    %c1 = arith.constant 1 : index
    %c0_3 = arith.constant 0 : index
    %4 = vector.load %arg8[%c1, %c0_3] : memref<18x128xf32, #tpu.memory_space<vmem>>, vector<16x1xf32>
    tpu.vector_store %arg8[%c1, %c0_3], %1 {strides = array<i32>} : memref<18x128xf32, #tpu.memory_space<vmem>>, vector<16x1xf32>,
    %c1_4 = arith.constant 1 : index
    %c17_5 = arith.constant 17 : index
    %5 = vector.load %arg8[%c1_4, %c17_5] : memref<18x128xf32, #tpu.memory_space<vmem>>, vector<16x1xf32>
    tpu.vector_store %arg8[%c1_4, %c17_5], %1 {strides = array<i32>} : memref<18x128xf32, #tpu.memory_space<vmem>>, vector<16x1xf32>,
    %c0_6 = arith.constant 0 : index
    %c0_7 = arith.constant 0 : index
    %6 = vector.load %arg1[%c0_6, %c0_7] : memref<16x16xf32, #tpu.memory_space<vmem>>, vector<16x16xf32>
    %c1_8 = arith.constant 1 : index
    %c1_9 = arith.constant 1 : index
    %7 = vector.load %arg8[%c1_8, %c1_9] : memref<18x128xf32, #tpu.memory_space<vmem>>, vector<16x16xf32>
    tpu.vector_store %arg8[%c1_8, %c1_9], %6 {strides = array<i32>} : memref<18x128xf32, #tpu.memory_space<vmem>>, vector<16x16xf32>,
    %c0_10 = arith.constant 0 : index
    %c0_11 = arith.constant 0 : index
    %8 = vector.load %arg8[%c0_10, %c0_11] : memref<18x128xf32, #tpu.memory_space<vmem>>, vector<18x128xf32>
    %9 = vector.extract_strided_slice %8 {offsets = [0, 0], sizes = [16, 128], strides = [1, 1]} : vector<18x128xf32> to vector<16x128xf32>
    %10 = vector.extract_strided_slice %8 {offsets = [1, 0], sizes = [16, 128], strides = [1, 1]} : vector<18x128xf32> to vector<16x128xf32>
    %11 = arith.addf %9, %10 : vector<16x128xf32>
    %12 = vector.extract_strided_slice %8 {offsets = [2, 0], sizes = [16, 128], strides = [1, 1]} : vector<18x128xf32> to vector<16x128xf32>
    %13 = arith.addf %11, %12 : vector<16x128xf32>
    %14 = vector.extract_strided_slice %13 {offsets = [0, 0], sizes = [16, 16], strides = [1, 1]} : vector<16x128xf32> to vector<16x16xf32>
    %15 = vector.extract_strided_slice %13 {offsets = [0, 2], sizes = [16, 16], strides = [1, 1]} : vector<16x128xf32> to vector<16x16xf32>
    %16 = arith.subf %14, %15 : vector<16x16xf32>
    %c0_12 = arith.constant 0 : index
    %c0_13 = arith.constant 0 : index
    %17 = vector.load %arg4[%c0_12, %c0_13] : memref<16x16xf32, #tpu.memory_space<vmem>>, vector<16x16xf32>
    tpu.vector_store %arg4[%c0_12, %c0_13], %16 {strides = array<i32>} : memref<16x16xf32, #tpu.memory_space<vmem>>, vector<16x16xf32>,
    %cst_14 = arith.constant 0.000000e+00 : f32
    %18 = vector.broadcast %cst_14 : f32 to vector<16x16xf32>
    %19 = arith.maximumf %16, %18 : vector<16x16xf32>
    %c0_15 = arith.constant 0 : index
    %c0_16 = arith.constant 0 : index
    %20 = vector.load %arg5[%c0_15, %c0_16] : memref<16x16xf32, #tpu.memory_space<vmem>>, vector<16x16xf32>
    tpu.vector_store %arg5[%c0_15, %c0_16], %19 {strides = array<i32>} : memref<16x16xf32, #tpu.memory_space<vmem>>, vector<16x16xf32>,
    %c1_17 = arith.constant 1 : index
    %c1_18 = arith.constant 1 : index
    %21 = vector.load %arg8[%c1_17, %c1_18] : memref<18x128xf32, #tpu.memory_space<vmem>>, vector<16x16xf32>
    tpu.vector_store %arg8[%c1_17, %c1_18], %19 {strides = array<i32>} : memref<18x128xf32, #tpu.memory_space<vmem>>, vector<16x16xf32>,
    %c0_19 = arith.constant 0 : index
    %c0_20 = arith.constant 0 : index
    %22 = vector.load %arg8[%c0_19, %c0_20] : memref<18x128xf32, #tpu.memory_space<vmem>>, vector<18x128xf32>
    %23 = vector.extract_strided_slice %22 {offsets = [0, 0], sizes = [16, 128], strides = [1, 1]} : vector<18x128xf32> to vector<16x128xf32>
    %24 = vector.extract_strided_slice %22 {offsets = [1, 0], sizes = [16, 128], strides = [1, 1]} : vector<18x128xf32> to vector<16x128xf32>
    %25 = arith.maximumf %23, %24 : vector<16x128xf32>
    %26 = vector.extract_strided_slice %22 {offsets = [2, 0], sizes = [16, 128], strides = [1, 1]} : vector<18x128xf32> to vector<16x128xf32>
    %27 = arith.maximumf %25, %26 : vector<16x128xf32>
    %28 = vector.extract_strided_slice %27 {offsets = [0, 0], sizes = [16, 16], strides = [1, 1]} : vector<16x128xf32> to vector<16x16xf32>
    %29 = vector.extract_strided_slice %27 {offsets = [0, 1], sizes = [16, 16], strides = [1, 1]} : vector<16x128xf32> to vector<16x16xf32>
    %30 = arith.maximumf %28, %29 : vector<16x16xf32>
    %31 = vector.extract_strided_slice %27 {offsets = [0, 2], sizes = [16, 16], strides = [1, 1]} : vector<16x128xf32> to vector<16x16xf32>
    %32 = arith.maximumf %30, %31 : vector<16x16xf32>
    %c0_21 = arith.constant 0 : index
    %c0_22 = arith.constant 0 : index
    %33 = vector.load %arg6[%c0_21, %c0_22] : memref<16x16xf32, #tpu.memory_space<vmem>>, vector<16x16xf32>
    tpu.vector_store %arg6[%c0_21, %c0_22], %32 {strides = array<i32>} : memref<16x16xf32, #tpu.memory_space<vmem>>, vector<16x16xf32>,
    %34 = vector.extract_strided_slice %32 {offsets = [0, 0], sizes = [1, 16], strides = [1, 1]} : vector<16x16xf32> to vector<1x16xf32>
    %c0_23 = arith.constant 0 : index
    %c0_24 = arith.constant 0 : index
    %c0_25 = arith.constant 0 : index
    %35 = vector.load %arg2[%c0_23, %c0_24, %c0_25] : memref<16x16x128xf32, #tpu.memory_space<vmem>>, vector<1x16x128xf32>
    %36 = vector.shape_cast %35 : vector<1x16x128xf32> to vector<16x128xf32>
    %cst_26 = arith.constant dense<0.000000e+00> : vector<1x128xf32>
    %37 = tpu.matmul %34, %36, %cst_26 {dimension_numbers = #tpu.dot_dimension_numbers<[1], [0], [0], [1], [0, 0, 1, 1], [], []>} : vector<1x16xf32>, vector<16x128xf32>, vector<1x128xf32> -> vector<1x128xf32>
    %38 = vector.extract_strided_slice %32 {offsets = [1, 0], sizes = [1, 16], strides = [1, 1]} : vector<16x16xf32> to vector<1x16xf32>
    %c1_27 = arith.constant 1 : index
    %c0_28 = arith.constant 0 : index
    %c0_29 = arith.constant 0 : index
    %39 = vector.load %arg2[%c1_27, %c0_28, %c0_29] : memref<16x16x128xf32, #tpu.memory_space<vmem>>, vector<1x16x128xf32>
    %40 = vector.shape_cast %39 : vector<1x16x128xf32> to vector<16x128xf32>
    %cst_30 = arith.constant dense<0.000000e+00> : vector<1x128xf32>
    %41 = tpu.matmul %38, %40, %cst_30 {dimension_numbers = #tpu.dot_dimension_numbers<[1], [0], [0], [1], [0, 0, 1, 1], [], []>} : vector<1x16xf32>, vector<16x128xf32>, vector<1x128xf32> -> vector<1x128xf32>
    %42 = vector.extract_strided_slice %32 {offsets = [2, 0], sizes = [1, 16], strides = [1, 1]} : vector<16x16xf32> to vector<1x16xf32>
    %c2 = arith.constant 2 : index
    %c0_31 = arith.constant 0 : index
    %c0_32 = arith.constant 0 : index
    %43 = vector.load %arg2[%c2, %c0_31, %c0_32] : memref<16x16x128xf32, #tpu.memory_space<vmem>>, vector<1x16x128xf32>
    %44 = vector.shape_cast %43 : vector<1x16x128xf32> to vector<16x128xf32>
    %cst_33 = arith.constant dense<0.000000e+00> : vector<1x128xf32>
    %45 = tpu.matmul %42, %44, %cst_33 {dimension_numbers = #tpu.dot_dimension_numbers<[1], [0], [0], [1], [0, 0, 1, 1], [], []>} : vector<1x16xf32>, vector<16x128xf32>, vector<1x128xf32> -> vector<1x128xf32>
    %46 = vector.extract_strided_slice %32 {offsets = [3, 0], sizes = [1, 16], strides = [1, 1]} : vector<16x16xf32> to vector<1x16xf32>
    %c3 = arith.constant 3 : index
    %c0_34 = arith.constant 0 : index
    %c0_35 = arith.constant 0 : index
    %47 = vector.load %arg2[%c3, %c0_34, %c0_35] : memref<16x16x128xf32, #tpu.memory_space<vmem>>, vector<1x16x128xf32>
    %48 = vector.shape_cast %47 : vector<1x16x128xf32> to vector<16x128xf32>
    %cst_36 = arith.constant dense<0.000000e+00> : vector<1x128xf32>
    %49 = tpu.matmul %46, %48, %cst_36 {dimension_numbers = #tpu.dot_dimension_numbers<[1], [0], [0], [1], [0, 0, 1, 1], [], []>} : vector<1x16xf32>, vector<16x128xf32>, vector<1x128xf32> -> vector<1x128xf32>
    %50 = vector.extract_strided_slice %32 {offsets = [4, 0], sizes = [1, 16], strides = [1, 1]} : vector<16x16xf32> to vector<1x16xf32>
    %c4 = arith.constant 4 : index
    %c0_37 = arith.constant 0 : index
    %c0_38 = arith.constant 0 : index
    %51 = vector.load %arg2[%c4, %c0_37, %c0_38] : memref<16x16x128xf32, #tpu.memory_space<vmem>>, vector<1x16x128xf32>
    %52 = vector.shape_cast %51 : vector<1x16x128xf32> to vector<16x128xf32>
    %cst_39 = arith.constant dense<0.000000e+00> : vector<1x128xf32>
    %53 = tpu.matmul %50, %52, %cst_39 {dimension_numbers = #tpu.dot_dimension_numbers<[1], [0], [0], [1], [0, 0, 1, 1], [], []>} : vector<1x16xf32>, vector<16x128xf32>, vector<1x128xf32> -> vector<1x128xf32>
    %54 = vector.extract_strided_slice %32 {offsets = [5, 0], sizes = [1, 16], strides = [1, 1]} : vector<16x16xf32> to vector<1x16xf32>
    %c5 = arith.constant 5 : index
    %c0_40 = arith.constant 0 : index
    %c0_41 = arith.constant 0 : index
    %55 = vector.load %arg2[%c5, %c0_40, %c0_41] : memref<16x16x128xf32, #tpu.memory_space<vmem>>, vector<1x16x128xf32>
    %56 = vector.shape_cast %55 : vector<1x16x128xf32> to vector<16x128xf32>
    %cst_42 = arith.constant dense<0.000000e+00> : vector<1x128xf32>
    %57 = tpu.matmul %54, %56, %cst_42 {dimension_numbers = #tpu.dot_dimension_numbers<[1], [0], [0], [1], [0, 0, 1, 1], [], []>} : vector<1x16xf32>, vector<16x128xf32>, vector<1x128xf32> -> vector<1x128xf32>
    %58 = vector.extract_strided_slice %32 {offsets = [6, 0], sizes = [1, 16], strides = [1, 1]} : vector<16x16xf32> to vector<1x16xf32>
    %c6 = arith.constant 6 : index
    %c0_43 = arith.constant 0 : index
    %c0_44 = arith.constant 0 : index
    %59 = vector.load %arg2[%c6, %c0_43, %c0_44] : memref<16x16x128xf32, #tpu.memory_space<vmem>>, vector<1x16x128xf32>
    %60 = vector.shape_cast %59 : vector<1x16x128xf32> to vector<16x128xf32>
    %cst_45 = arith.constant dense<0.000000e+00> : vector<1x128xf32>
    %61 = tpu.matmul %58, %60, %cst_45 {dimension_numbers = #tpu.dot_dimension_numbers<[1], [0], [0], [1], [0, 0, 1, 1], [], []>} : vector<1x16xf32>, vector<16x128xf32>, vector<1x128xf32> -> vector<1x128xf32>
    %62 = vector.extract_strided_slice %32 {offsets = [7, 0], sizes = [1, 16], strides = [1, 1]} : vector<16x16xf32> to vector<1x16xf32>
    %c7 = arith.constant 7 : index
    %c0_46 = arith.constant 0 : index
    %c0_47 = arith.constant 0 : index
    %63 = vector.load %arg2[%c7, %c0_46, %c0_47] : memref<16x16x128xf32, #tpu.memory_space<vmem>>, vector<1x16x128xf32>
    %64 = vector.shape_cast %63 : vector<1x16x128xf32> to vector<16x128xf32>
    %cst_48 = arith.constant dense<0.000000e+00> : vector<1x128xf32>
    %65 = tpu.matmul %62, %64, %cst_48 {dimension_numbers = #tpu.dot_dimension_numbers<[1], [0], [0], [1], [0, 0, 1, 1], [], []>} : vector<1x16xf32>, vector<16x128xf32>, vector<1x128xf32> -> vector<1x128xf32>
    %66 = vector.extract_strided_slice %32 {offsets = [8, 0], sizes = [1, 16], strides = [1, 1]} : vector<16x16xf32> to vector<1x16xf32>
    %c8 = arith.constant 8 : index
    %c0_49 = arith.constant 0 : index
    %c0_50 = arith.constant 0 : index
    %67 = vector.load %arg2[%c8, %c0_49, %c0_50] : memref<16x16x128xf32, #tpu.memory_space<vmem>>, vector<1x16x128xf32>
    %68 = vector.shape_cast %67 : vector<1x16x128xf32> to vector<16x128xf32>
    %cst_51 = arith.constant dense<0.000000e+00> : vector<1x128xf32>
    %69 = tpu.matmul %66, %68, %cst_51 {dimension_numbers = #tpu.dot_dimension_numbers<[1], [0], [0], [1], [0, 0, 1, 1], [], []>} : vector<1x16xf32>, vector<16x128xf32>, vector<1x128xf32> -> vector<1x128xf32>
    %70 = vector.extract_strided_slice %32 {offsets = [9, 0], sizes = [1, 16], strides = [1, 1]} : vector<16x16xf32> to vector<1x16xf32>
    %c9 = arith.constant 9 : index
    %c0_52 = arith.constant 0 : index
    %c0_53 = arith.constant 0 : index
    %71 = vector.load %arg2[%c9, %c0_52, %c0_53] : memref<16x16x128xf32, #tpu.memory_space<vmem>>, vector<1x16x128xf32>
    %72 = vector.shape_cast %71 : vector<1x16x128xf32> to vector<16x128xf32>
    %cst_54 = arith.constant dense<0.000000e+00> : vector<1x128xf32>
    %73 = tpu.matmul %70, %72, %cst_54 {dimension_numbers = #tpu.dot_dimension_numbers<[1], [0], [0], [1], [0, 0, 1, 1], [], []>} : vector<1x16xf32>, vector<16x128xf32>, vector<1x128xf32> -> vector<1x128xf32>
    %74 = vector.extract_strided_slice %32 {offsets = [10, 0], sizes = [1, 16], strides = [1, 1]} : vector<16x16xf32> to vector<1x16xf32>
    %c10 = arith.constant 10 : index
    %c0_55 = arith.constant 0 : index
    %c0_56 = arith.constant 0 : index
    %75 = vector.load %arg2[%c10, %c0_55, %c0_56] : memref<16x16x128xf32, #tpu.memory_space<vmem>>, vector<1x16x128xf32>
    %76 = vector.shape_cast %75 : vector<1x16x128xf32> to vector<16x128xf32>
    %cst_57 = arith.constant dense<0.000000e+00> : vector<1x128xf32>
    %77 = tpu.matmul %74, %76, %cst_57 {dimension_numbers = #tpu.dot_dimension_numbers<[1], [0], [0], [1], [0, 0, 1, 1], [], []>} : vector<1x16xf32>, vector<16x128xf32>, vector<1x128xf32> -> vector<1x128xf32>
    %78 = vector.extract_strided_slice %32 {offsets = [11, 0], sizes = [1, 16], strides = [1, 1]} : vector<16x16xf32> to vector<1x16xf32>
    %c11 = arith.constant 11 : index
    %c0_58 = arith.constant 0 : index
    %c0_59 = arith.constant 0 : index
    %79 = vector.load %arg2[%c11, %c0_58, %c0_59] : memref<16x16x128xf32, #tpu.memory_space<vmem>>, vector<1x16x128xf32>
    %80 = vector.shape_cast %79 : vector<1x16x128xf32> to vector<16x128xf32>
    %cst_60 = arith.constant dense<0.000000e+00> : vector<1x128xf32>
    %81 = tpu.matmul %78, %80, %cst_60 {dimension_numbers = #tpu.dot_dimension_numbers<[1], [0], [0], [1], [0, 0, 1, 1], [], []>} : vector<1x16xf32>, vector<16x128xf32>, vector<1x128xf32> -> vector<1x128xf32>
    %82 = vector.extract_strided_slice %32 {offsets = [12, 0], sizes = [1, 16], strides = [1, 1]} : vector<16x16xf32> to vector<1x16xf32>
    %c12 = arith.constant 12 : index
    %c0_61 = arith.constant 0 : index
    %c0_62 = arith.constant 0 : index
    %83 = vector.load %arg2[%c12, %c0_61, %c0_62] : memref<16x16x128xf32, #tpu.memory_space<vmem>>, vector<1x16x128xf32>
    %84 = vector.shape_cast %83 : vector<1x16x128xf32> to vector<16x128xf32>
    %cst_63 = arith.constant dense<0.000000e+00> : vector<1x128xf32>
    %85 = tpu.matmul %82, %84, %cst_63 {dimension_numbers = #tpu.dot_dimension_numbers<[1], [0], [0], [1], [0, 0, 1, 1], [], []>} : vector<1x16xf32>, vector<16x128xf32>, vector<1x128xf32> -> vector<1x128xf32>
    %86 = vector.extract_strided_slice %32 {offsets = [13, 0], sizes = [1, 16], strides = [1, 1]} : vector<16x16xf32> to vector<1x16xf32>
    %c13 = arith.constant 13 : index
    %c0_64 = arith.constant 0 : index
    %c0_65 = arith.constant 0 : index
    %87 = vector.load %arg2[%c13, %c0_64, %c0_65] : memref<16x16x128xf32, #tpu.memory_space<vmem>>, vector<1x16x128xf32>
    %88 = vector.shape_cast %87 : vector<1x16x128xf32> to vector<16x128xf32>
    %cst_66 = arith.constant dense<0.000000e+00> : vector<1x128xf32>
    %89 = tpu.matmul %86, %88, %cst_66 {dimension_numbers = #tpu.dot_dimension_numbers<[1], [0], [0], [1], [0, 0, 1, 1], [], []>} : vector<1x16xf32>, vector<16x128xf32>, vector<1x128xf32> -> vector<1x128xf32>
    %90 = vector.extract_strided_slice %32 {offsets = [14, 0], sizes = [1, 16], strides = [1, 1]} : vector<16x16xf32> to vector<1x16xf32>
    %c14 = arith.constant 14 : index
    %c0_67 = arith.constant 0 : index
    %c0_68 = arith.constant 0 : index
    %91 = vector.load %arg2[%c14, %c0_67, %c0_68] : memref<16x16x128xf32, #tpu.memory_space<vmem>>, vector<1x16x128xf32>
    %92 = vector.shape_cast %91 : vector<1x16x128xf32> to vector<16x128xf32>
    %cst_69 = arith.constant dense<0.000000e+00> : vector<1x128xf32>
    %93 = tpu.matmul %90, %92, %cst_69 {dimension_numbers = #tpu.dot_dimension_numbers<[1], [0], [0], [1], [0, 0, 1, 1], [], []>} : vector<1x16xf32>, vector<16x128xf32>, vector<1x128xf32> -> vector<1x128xf32>
    %94 = vector.extract_strided_slice %32 {offsets = [15, 0], sizes = [1, 16], strides = [1, 1]} : vector<16x16xf32> to vector<1x16xf32>
    %c15 = arith.constant 15 : index
    %c0_70 = arith.constant 0 : index
    %c0_71 = arith.constant 0 : index
    %95 = vector.load %arg2[%c15, %c0_70, %c0_71] : memref<16x16x128xf32, #tpu.memory_space<vmem>>, vector<1x16x128xf32>
    %96 = vector.shape_cast %95 : vector<1x16x128xf32> to vector<16x128xf32>
    %cst_72 = arith.constant dense<0.000000e+00> : vector<1x128xf32>
    %97 = tpu.matmul %94, %96, %cst_72 {dimension_numbers = #tpu.dot_dimension_numbers<[1], [0], [0], [1], [0, 0, 1, 1], [], []>} : vector<1x16xf32>, vector<16x128xf32>, vector<1x128xf32> -> vector<1x128xf32>
    %98 = arith.addf %37, %41 : vector<1x128xf32>
    %99 = arith.addf %45, %49 : vector<1x128xf32>
    %100 = arith.addf %53, %57 : vector<1x128xf32>
    %101 = arith.addf %61, %65 : vector<1x128xf32>
    %102 = arith.addf %69, %73 : vector<1x128xf32>
    %103 = arith.addf %77, %81 : vector<1x128xf32>
    %104 = arith.addf %85, %89 : vector<1x128xf32>
    %105 = arith.addf %93, %97 : vector<1x128xf32>
    %106 = arith.addf %98, %99 : vector<1x128xf32>
    %107 = arith.addf %100, %101 : vector<1x128xf32>
    %108 = arith.addf %102, %103 : vector<1x128xf32>
    %109 = arith.addf %104, %105 : vector<1x128xf32>
    %110 = arith.addf %106, %107 : vector<1x128xf32>
    %111 = arith.addf %108, %109 : vector<1x128xf32>
    %112 = arith.addf %110, %111 : vector<1x128xf32>
    %c0_73 = arith.constant 0 : index
    %c0_74 = arith.constant 0 : index
    %113 = vector.load %arg3[%c0_73, %c0_74] : memref<1x128xf32, #tpu.memory_space<vmem>>, vector<1x128xf32>
    %114 = arith.addf %112, %113 : vector<1x128xf32>
    %c0_75 = arith.constant 0 : index
    %c0_76 = arith.constant 0 : index
    %115 = vector.load %arg7[%c0_75, %c0_76] : memref<1x128xf32, #tpu.memory_space<vmem>>, vector<1x128xf32>
    tpu.vector_store %arg7[%c0_75, %c0_76], %114 {strides = array<i32>} : memref<1x128xf32, #tpu.memory_space<vmem>>, vector<1x128xf32>,
    return
  }
  func.func @transform_0(%arg0: i32) -> (i32, i32) {
    %c0_i32 = arith.constant 0 : i32
    %c0_i32_0 = arith.constant 0 : i32
    %c0_i32_1 = arith.constant 0 : i32
    return %c0_i32, %c0_i32_0 : i32, i32
  }
  func.func @transform_1(%arg0: i32) -> (i32, i32, i32) {
    %c0_i32 = arith.constant 0 : i32
    %c0_i32_0 = arith.constant 0 : i32
    %c0_i32_1 = arith.constant 0 : i32
    %c0_i32_2 = arith.constant 0 : i32
    return %c0_i32, %c0_i32_0, %c0_i32_1 : i32, i32, i32
  }
  func.func @transform_2(%arg0: i32) -> (i32, i32) {
    %c0_i32 = arith.constant 0 : i32
    %c0_i32_0 = arith.constant 0 : i32
    %c0_i32_1 = arith.constant 0 : i32
    return %c0_i32, %c0_i32_0 : i32, i32
  }
  func.func @transform_3(%arg0: i32) -> (i32, i32) {
    %c0_i32 = arith.constant 0 : i32
    %c0_i32_0 = arith.constant 0 : i32
    %c0_i32_1 = arith.constant 0 : i32
    return %c0_i32, %c0_i32_0 : i32, i32
  }
  func.func @transform_4(%arg0: i32) -> (i32, i32) {
    %c0_i32 = arith.constant 0 : i32
    %c0_i32_0 = arith.constant 0 : i32
    %c0_i32_1 = arith.constant 0 : i32
    return %c0_i32, %c0_i32_0 : i32, i32
  }
  func.func @transform_5(%arg0: i32) -> (i32, i32) {
    %c0_i32 = arith.constant 0 : i32
    %c0_i32_0 = arith.constant 0 : i32
    %c0_i32_1 = arith.constant 0 : i32
    return %c0_i32, %c0_i32_0 : i32, i32
  }
  func.func @transform_6(%arg0: i32) -> (i32, i32) {
    %c0_i32 = arith.constant 0 : i32
    %c0_i32_0 = arith.constant 0 : i32
    %c0_i32_1 = arith.constant 0 : i32
    return %c0_i32, %c0_i32_0 : i32, i32
  }
}

</mosaic_0001>

<llo_original>
// kernel: fwd.1
$region0: #{fwd.1}
  #allocation0 [shape = 'u32[]', space=smem, size = 0x4, offset = 0x4, fixed_abs, tag = 'smem constant byte address 0x4 - core index']
  #allocation1 [shape = 'u32[144,128]{1,0:T(1,128)}', space=vmem, size = 0x12000, scoped, tag = 'internal scratch']
  #allocation2 [shape = 'f32[18,128]{1,0:T(8,128)}', space=vmem, size = 0x3000, scoped, tag = 'scratch operand']
  %s0 = inlined_call_operand.hbm [shape: f32[16,16], index: 0, kind: input, shape index: {}]
  %s1 = inlined_call_operand.hbm [shape: f32[16,16,128], index: 1, kind: input, shape index: {}]
  %s2 = inlined_call_operand.vmem [shape: f32[1,128], index: 2, kind: input, shape index: {}]
  %s3 = inlined_call_operand.hbm [shape: f32[16,16], index: 3, kind: output, shape index: {0}]
  %s4 = inlined_call_operand.hbm [shape: f32[16,16], index: 4, kind: output, shape index: {1}]
  %s5 = inlined_call_operand.hbm [shape: f32[16,16], index: 5, kind: output, shape index: {2}]
  %s6 = inlined_call_operand.hbm [shape: f32[1,128], index: 6, kind: output, shape index: {3}]
  %7 = xla_tuple %s3, %s4, %s5, %s6
  %s8 = sld [smem:[#allocation0]]
  $region54: #{fwd.1} parent=0
    _
  %s10 = ssub.s32 1, %s8
  %s11 = scalar_select 0, %s10, %s8
  $region1: #{fwd.1} parent=0
    #allocation3 [shape = 'u8[8192]{0}', space=vmem, size = 0x2000, scoped, tag = 'input window, operand 0, single buffered']
    #allocation4 [shape = 's32[1]{0}', space=sflag, size = 0x4, scoped, tag = 'scoped memory for fwd.1']
    #allocation5 [shape = 's32[1]{0}', space=sflag, size = 0x4, scoped, tag = 'scoped memory for fwd.1']
    #allocation6 [shape = 'u8[131072]{0}', space=vmem, size = 0x20000, scoped, tag = 'input window, operand 1, single buffered']
    #allocation7 [shape = 's32[1]{0}', space=sflag, size = 0x4, scoped, tag = 'scoped memory for fwd.1']
    #allocation8 [shape = 'u8[8192]{0}', space=vmem, size = 0x2000, scoped, tag = 'output window, operand 0, single buffered']
    #allocation9 [shape = 'u8[8192]{0}', space=vmem, size = 0x2000, scoped, tag = 'output window, operand 1, single buffered']
    #allocation10 [shape = 's32[1]{0}', space=sflag, size = 0x4, scoped, tag = 'scoped memory for fwd.1']
    #allocation11 [shape = 'u8[8192]{0}', space=vmem, size = 0x2000, scoped, tag = 'output window, operand 2, single buffered']
    #allocation12 [shape = 'u8[512]{0}', space=vmem, size = 0x400, scoped, tag = 'output window, operand 3, single buffered']
    #allocation13 [shape = 's32[1]{0}', space=sflag, size = 0x4, scoped, tag = 'scoped memory for fwd.1']
    %12 = vsyncpa [#allocation4], 0
    %13 = vsyncpa [#allocation7], 0
    %14 = vsyncpa [#allocation5], 0
    %15 = vsyncpa [#allocation10], 0
    %16 = vsyncpa [#allocation13], 0
    // Predicated region
    $region2: #{fwd.1} parent=1 // pred_check
      _
    $region3: #{fwd.1} parent=1 // pred_check_branch
      %18 = sbr.rel (0) target = $region5
    $region4: #{fwd.1} parent=1 // pred_region
      %s20 = ssub.s32 256, 256
      %21 = vsyncadd [#allocation4], %s20
      %s22 = sshll.u32 [#allocation3], 4
      %s23 = int_to_ptr.vmem [resolvable:$true] %s22
      %28 = dma.hbm_to_vmem [thread:$0]  %s0, 256, %s23, [#allocation4], 128, 128, 8
    $region5: #{fwd.1} parent=1 // pred_fallthru
      _
    // Predicated region
    $region6: #{fwd.1} parent=1 // pred_check
      _
    $region7: #{fwd.1} parent=1 // pred_check_branch
      %30 = sbr.rel (0) target = $region9
    $region8: #{fwd.1} parent=1 // pred_region
      %s32 = ssub.s32 4096, 4096
      %33 = vsyncadd [#allocation7], %s32
      %s34 = sshll.u32 [#allocation6], 4
      %s35 = int_to_ptr.vmem [resolvable:$true] %s34
      %40 = dma.hbm_to_vmem [thread:$0]  %s1, 4096, %s35, [#allocation7], 128, 128, 8
    $region9: #{fwd.1} parent=1 // pred_fallthru
      _
    // Predicated region
    $region10: #{fwd.1} parent=1 // pred_check
      _
    $region11: #{fwd.1} parent=1 // pred_check_branch
      %42 = sbr.rel (0) target = $region13
    $region12: #{fwd.1} parent=1 // pred_region
      _
    $region13: #{fwd.1} parent=1 // pred_fallthru
      _
    // Predicated region
    $region14: #{fwd.1} parent=1 // pred_check
      _
    $region15: #{fwd.1} parent=1 // pred_check_branch
      %44 = sbr.rel (0) target = $region17
    $region16: #{fwd.1} parent=1 // pred_region
      %45 = dma.done [#allocation4], 256
    $region17: #{fwd.1} parent=1 // pred_fallthru
      _
    // Predicated region
    $region18: #{fwd.1} parent=1 // pred_check
      _
    $region19: #{fwd.1} parent=1 // pred_check_branch
      %47 = sbr.rel (0) target = $region21
    $region20: #{fwd.1} parent=1 // pred_region
      %48 = dma.done [#allocation7], 4096
    $region21: #{fwd.1} parent=1 // pred_fallthru
      _
    %49 = vst [vmem:[#allocation2] sm:$0x1] 0.0
    %50 = vst [vmem:[#allocation2 + $0x11] sm:$0x1] 0.0
    %vm51 = vcmask 7168
    %52 = vst.msk [vmem:[#allocation2 + $0x1] sm:$0xff] %vm51, 0.0
    %53 = vst.msk [vmem:[#allocation2 + $0x9] sm:$0xff] %vm51, 0.0
    %vm54 = vcmask 146568
    %55 = vst.msk [vmem:[#allocation2 + $0x1] sm:$0xff] %vm54, 0.0
    %56 = vst.msk [vmem:[#allocation2 + $0x9] sm:$0xff] %vm54, 0.0
    %v57 = vld [vmem:[#allocation3] sm:$0xff]
    %v58 = vld [vmem:[#allocation3 + $0x8] sm:$0xff]
    %61 = vrot.lane.b32.xlu0 %v57, 1
    %v62 = vpop.permute.xlu0 %61
    %63 = vrot.lane.b32.xlu0 %v58, 1
    %v64 = vpop.permute.xlu0 %63
    %vm67 = vcmask 138248
    %68 = vst.msk [vmem:[#allocation2 + $0x1] sm:$0xff] %vm67, %v62
    %69 = vst.msk [vmem:[#allocation2 + $0x9] sm:$0xff] %vm67, %v64
    %v70 = vld [vmem:[#allocation2] sm:$0xff]
    %v71 = vld [vmem:[#allocation2 + $0x8] sm:$0xff]
    %v72 = vld [vmem:[#allocation2 + $0x10] sm:$0x3]
    %vm76 = vcmask 1046528
    %v77 = vrot.slane %v70, 1
    %v78 = vrot.slane %v71, 1
    %v79 = vsel %vm76, %v77, %v78
    %v80 = vrot.slane %v72, 1
    %v81 = vsel %vm76, %v78, %v80
    %v84 = vadd.f32 %v70, %v79
    %v85 = vadd.f32 %v71, %v81
    %vm86 = vcmask 1045504
    %v87 = vrot.slane %v70, 2
    %v88 = vrot.slane %v71, 2
    %v89 = vsel %vm86, %v87, %v88
    %v90 = vrot.slane %v72, 2
    %v91 = vsel %vm86, %v88, %v90
    %v94 = vadd.f32 %v84, %v89
    %v95 = vadd.f32 %v85, %v91
    %98 = vrot.lane.b32.xlu0 %v94, 126
    %v99 = vpop.permute.xlu0 %98
    %100 = vrot.lane.b32.xlu0 %v95, 126
    %v101 = vpop.permute.xlu0 %100
    %v104 = vsub.f32 %v94, %v99
    %v105 = vsub.f32 %v95, %v101
    %vm106 = vcmask 130048
    %107 = vst.msk [vmem:[#allocation8] sm:$0xff] %vm106, %v104
    %108 = vst.msk [vmem:[#allocation8 + $0x8] sm:$0xff] %vm106, %v105
    %v109 = vmax.f32 %v104, 0.0
    %v110 = vmax.f32 %v105, 0.0
    %111 = vst.msk [vmem:[#allocation9] sm:$0xff] %vm106, %v109
    %112 = vst.msk [vmem:[#allocation9 + $0x8] sm:$0xff] %vm106, %v110
    %115 = vrot.lane.b32.xlu0 %v109, 1
    %v116 = vpop.permute.xlu0 %115
    %117 = vrot.lane.b32.xlu0 %v110, 1
    %v118 = vpop.permute.xlu0 %117
    %121 = vst.msk [vmem:[#allocation2 + $0x1] sm:$0xff] %vm67, %v116
    %122 = vst.msk [vmem:[#allocation2 + $0x9] sm:$0xff] %vm67, %v118
    %v123 = vld [vmem:[#allocation2] sm:$0xff]
    %v124 = vld [vmem:[#allocation2 + $0x8] sm:$0xff]
    %v125 = vld [vmem:[#allocation2 + $0x10] sm:$0x3]
    %v129 = vrot.slane %v123, 1
    %v130 = vrot.slane %v124, 1
    %v131 = vsel %vm76, %v129, %v130
    %v132 = vrot.slane %v125, 1
    %v133 = vsel %vm76, %v130, %v132
    %v136 = vmax.f32 %v123, %v131
    %v137 = vmax.f32 %v124, %v133
    %v138 = vrot.slane %v123, 2
    %v139 = vrot.slane %v124, 2
    %v140 = vsel %vm86, %v138, %v139
    %v141 = vrot.slane %v125, 2
    %v142 = vsel %vm86, %v139, %v141
    %v145 = vmax.f32 %v136, %v140
    %v146 = vmax.f32 %v137, %v142
    %149 = vrot.lane.b32.xlu0 %v145, 127
    %v150 = vpop.permute.xlu0 %149
    %151 = vrot.lane.b32.xlu0 %v146, 127
    %v152 = vpop.permute.xlu0 %151
    %v155 = vmax.f32 %v145, %v150
    %v156 = vmax.f32 %v146, %v152
    %157 = vrot.lane.b32.xlu0 %v145, 126
    %v158 = vpop.permute.xlu0 %157
    %159 = vrot.lane.b32.xlu0 %v146, 126
    %v160 = vpop.permute.xlu0 %159
    %v163 = vmax.f32 %v155, %v158
    %v164 = vmax.f32 %v156, %v160
    %165 = vst.msk [vmem:[#allocation11] sm:$0xff] %vm106, %v163
    %166 = vst.msk [vmem:[#allocation11 + $0x8] sm:$0xff] %vm106, %v164
    %v167 = vld [vmem:[#allocation6] sm:$0xff]
    %v168 = vld [vmem:[#allocation6 + $0x8] sm:$0xff]
    %s169 = scalar_lea.vmem [#allocation6], 16
    %v170 = vld [vmem:[%s169] sm:$0xff]
    %v171 = vld [vmem:[%s169 + $0x8] sm:$0xff]
    %v173 = vrot.slane %v163, 1
    %v174 = vsel %vm106, %v173, 0
    %176 = vmatprep.subr.mxu0 0.0
    %177 = vmatpush1.msra.mxu0 %v170
    %178 = vmatprep.subr.mxu0 0.0
    %179 = vmatpush1.msra.mxu0 %v171
    %180 = vmatprep.subr.mxu0 0.0
    %181 = vmatpush1.msra.mxu0 0.0
    %182 = vmatprep.subr.mxu0 0.0
    %183 = vmatpush1.msra.mxu0 0.0
    %184 = vmatprep.subr.mxu0 0.0
    %185 = vmatpush1.msra.mxu0 0.0
    %186 = vmatprep.subr.mxu0 0.0
    %187 = vmatpush1.msra.mxu0 0.0
    %188 = vmatprep.subr.mxu0 0.0
    %189 = vmatpush1.msra.mxu0 0.0
    %190 = vmatprep.subr.mxu0 0.0
    %191 = vmatpush1.msra.mxu0 0.0
    %192 = vmatprep.subr.mxu0 0.0
    %193 = vmatpush1.msra.mxu0 0.0
    %194 = vmatprep.subr.mxu0 0.0
    %195 = vmatpush1.msra.mxu0 0.0
    %196 = vmatprep.subr.mxu0 0.0
    %197 = vmatpush1.msra.mxu0 0.0
    %198 = vmatprep.subr.mxu0 0.0
    %199 = vmatpush1.msra.mxu0 0.0
    %200 = vmatprep.subr.mxu0 0.0
    %201 = vmatpush1.msra.mxu0 0.0
    %202 = vmatprep.subr.mxu0 0.0
    %203 = vmatpush1.msra.mxu0 0.0
    %204 = vmatprep.subr.mxu0 0.0
    %205 = vmatpush1.msra.mxu0 0.0
    %206 = vmatprep.subr.mxu0 0.0
    %207 = vmatpush1.msra.mxu0 0.0
    %208 = vmatprep.subr.mxu0 0.0
    %209 = vmatpush1.msra.mxu0 0.0
    %210 = vmatprep.subr.mxu0 0.0
    %211 = vmatpush1.msra.mxu0 0.0
    %212 = vmatprep.subr.mxu0 0.0
    %213 = vmatpush1.msra.mxu0 0.0
    %214 = vmatprep.subr.mxu0 0.0
    %215 = vmatpush1.msra.mxu0 0.0
    %216 = vmatprep.subr.mxu0 0.0
    %217 = vmatpush1.msra.mxu0 0.0
    %218 = vmatprep.subr.mxu0 0.0
    %219 = vmatpush1.msra.mxu0 0.0
    %220 = vmatprep.subr.mxu0 0.0
    %221 = vmatpush1.msra.mxu0 0.0
    %222 = vmatprep.subr.mxu0 0.0
    %223 = vmatpush1.msra.mxu0 0.0
    %224 = vmatprep.subr.mxu0 0.0
    %225 = vmatpush1.msra.mxu0 0.0
    %226 = vmatprep.subr.mxu0 0.0
    %227 = vmatpush1.msra.mxu0 0.0
    %228 = vmatprep.subr.mxu0 0.0
    %229 = vmatpush1.msra.mxu0 0.0
    %230 = vmatprep.subr.mxu0 0.0
    %231 = vmatpush1.msra.mxu0 0.0
    %232 = vmatprep.subr.mxu0 0.0
    %233 = vmatpush1.msra.mxu0 0.0
    %234 = vmatprep.subr.mxu0 0.0
    %235 = vmatpush1.msra.mxu0 0.0
    %236 = vmatprep.subr.mxu0 0.0
    %237 = vmatpush1.msra.mxu0 0.0
    %238 = vmatprep.subr.mxu0 0.0
    %239 = vmatpush1.msra.mxu0 0.0
    %240 = vmatprep.mubr.f32.mxu0 0.0
    %241 = vmatmul.mubr.f32.gmra.mrb[0].mxu0 %v174
    %v242 = vpop.f32.mrb[0].mxu0
    %v243 = vadd.f32 0.0, %v242
    %v244 = vpop.f32.mrb[0].mxu0
    %245 = vdwg.mxu0
    %s246 = scalar_lea.vmem [#allocation6], 32
    %v247 = vld [vmem:[%s246] sm:$0xff]
    %v248 = vld [vmem:[%s246 + $0x8] sm:$0xff]
    %s249 = scalar_lea.vmem [#allocation6], 48
    %v250 = vld [vmem:[%s249] sm:$0xff]
    %v251 = vld [vmem:[%s249 + $0x8] sm:$0xff]
    %v252 = vrot.slane %v163, 3
    %v253 = vsel %vm106, %v252, 0
    %255 = vmatprep.subr.mxu0 0.0
    %256 = vmatpush1.msra.mxu0 %v250
    %257 = vmatprep.subr.mxu0 0.0
    %258 = vmatpush1.msra.mxu0 %v251
    %259 = vmatprep.subr.mxu0 0.0
    %260 = vmatpush1.msra.mxu0 0.0
    %261 = vmatprep.subr.mxu0 0.0
    %262 = vmatpush1.msra.mxu0 0.0
    %263 = vmatprep.subr.mxu0 0.0
    %264 = vmatpush1.msra.mxu0 0.0
    %265 = vmatprep.subr.mxu0 0.0
    %266 = vmatpush1.msra.mxu0 0.0
    %267 = vmatprep.subr.mxu0 0.0
    %268 = vmatpush1.msra.mxu0 0.0
    %269 = vmatprep.subr.mxu0 0.0
    %270 = vmatpush1.msra.mxu0 0.0
    %271 = vmatprep.subr.mxu0 0.0
    %272 = vmatpush1.msra.mxu0 0.0
    %273 = vmatprep.subr.mxu0 0.0
    %274 = vmatpush1.msra.mxu0 0.0
    %275 = vmatprep.subr.mxu0 0.0
    %276 = vmatpush1.msra.mxu0 0.0
    %277 = vmatprep.subr.mxu0 0.0
    %278 = vmatpush1.msra.mxu0 0.0
    %279 = vmatprep.subr.mxu0 0.0
    %280 = vmatpush1.msra.mxu0 0.0
    %281 = vmatprep.subr.mxu0 0.0
    %282 = vmatpush1.msra.mxu0 0.0
    %283 = vmatprep.subr.mxu0 0.0
    %284 = vmatpush1.msra.mxu0 0.0
    %285 = vmatprep.subr.mxu0 0.0
    %286 = vmatpush1.msra.mxu0 0.0
    %287 = vmatprep.subr.mxu0 0.0
    %288 = vmatpush1.msra.mxu0 0.0
    %289 = vmatprep.subr.mxu0 0.0
    %290 = vmatpush1.msra.mxu0 0.0
    %291 = vmatprep.subr.mxu0 0.0
    %292 = vmatpush1.msra.mxu0 0.0
    %293 = vmatprep.subr.mxu0 0.0
    %294 = vmatpush1.msra.mxu0 0.0
    %295 = vmatprep.subr.mxu0 0.0
    %296 = vmatpush1.msra.mxu0 0.0
    %297 = vmatprep.subr.mxu0 0.0
    %298 = vmatpush1.msra.mxu0 0.0
    %299 = vmatprep.subr.mxu0 0.0
    %300 = vmatpush1.msra.mxu0 0.0
    %301 = vmatprep.subr.mxu0 0.0
    %302 = vmatpush1.msra.mxu0 0.0
    %303 = vmatprep.subr.mxu0 0.0
    %304 = vmatpush1.msra.mxu0 0.0
    %305 = vmatprep.subr.mxu0 0.0
    %306 = vmatpush1.msra.mxu0 0.0
    %307 = vmatprep.subr.mxu0 0.0
    %308 = vmatpush1.msra.mxu0 0.0
    %309 = vmatprep.subr.mxu0 0.0
    %310 = vmatpush1.msra.mxu0 0.0
    %311 = vmatprep.subr.mxu0 0.0
    %312 = vmatpush1.msra.mxu0 0.0
    %313 = vmatprep.subr.mxu0 0.0
    %314 = vmatpush1.msra.mxu0 0.0
    %315 = vmatprep.subr.mxu0 0.0
    %316 = vmatpush1.msra.mxu0 0.0
    %317 = vmatprep.subr.mxu0 0.0
    %318 = vmatpush1.msra.mxu0 0.0
    %319 = vmatprep.mubr.f32.mxu0 0.0
    %320 = vmatmul.mubr.f32.gmra.mrb[0].mxu0 %v253
    %v321 = vpop.f32.mrb[0].mxu0
    %v322 = vadd.f32 0.0, %v321
    %v323 = vpop.f32.mrb[0].mxu0
    %324 = vdwg.mxu0
    %s325 = scalar_lea.vmem [#allocation6], 64
    %v326 = vld [vmem:[%s325] sm:$0xff]
    %v327 = vld [vmem:[%s325 + $0x8] sm:$0xff]
    %s328 = scalar_lea.vmem [#allocation6], 80
    %v329 = vld [vmem:[%s328] sm:$0xff]
    %v330 = vld [vmem:[%s328 + $0x8] sm:$0xff]
    %v331 = vrot.slane %v163, 5
    %v332 = vsel %vm106, %v331, 0
    %334 = vmatprep.subr.mxu0 0.0
    %335 = vmatpush1.msra.mxu0 %v329
    %336 = vmatprep.subr.mxu0 0.0
    %337 = vmatpush1.msra.mxu0 %v330
    %338 = vmatprep.subr.mxu0 0.0
    %339 = vmatpush1.msra.mxu0 0.0
    %340 = vmatprep.subr.mxu0 0.0
    %341 = vmatpush1.msra.mxu0 0.0
    %342 = vmatprep.subr.mxu0 0.0
    %343 = vmatpush1.msra.mxu0 0.0
    %344 = vmatprep.subr.mxu0 0.0
    %345 = vmatpush1.msra.mxu0 0.0
    %346 = vmatprep.subr.mxu0 0.0
    %347 = vmatpush1.msra.mxu0 0.0
    %348 = vmatprep.subr.mxu0 0.0
    %349 = vmatpush1.msra.mxu0 0.0
    %350 = vmatprep.subr.mxu0 0.0
    %351 = vmatpush1.msra.mxu0 0.0
    %352 = vmatprep.subr.mxu0 0.0
    %353 = vmatpush1.msra.mxu0 0.0
    %354 = vmatprep.subr.mxu0 0.0
    %355 = vmatpush1.msra.mxu0 0.0
    %356 = vmatprep.subr.mxu0 0.0
    %357 = vmatpush1.msra.mxu0 0.0
    %358 = vmatprep.subr.mxu0 0.0
    %359 = vmatpush1.msra.mxu0 0.0
    %360 = vmatprep.subr.mxu0 0.0
    %361 = vmatpush1.msra.mxu0 0.0
    %362 = vmatprep.subr.mxu0 0.0
    %363 = vmatpush1.msra.mxu0 0.0
    %364 = vmatprep.subr.mxu0 0.0
    %365 = vmatpush1.msra.mxu0 0.0
    %366 = vmatprep.subr.mxu0 0.0
    %367 = vmatpush1.msra.mxu0 0.0
    %368 = vmatprep.subr.mxu0 0.0
    %369 = vmatpush1.msra.mxu0 0.0
    %370 = vmatprep.subr.mxu0 0.0
    %371 = vmatpush1.msra.mxu0 0.0
    %372 = vmatprep.subr.mxu0 0.0
    %373 = vmatpush1.msra.mxu0 0.0
    %374 = vmatprep.subr.mxu0 0.0
    %375 = vmatpush1.msra.mxu0 0.0
    %376 = vmatprep.subr.mxu0 0.0
    %377 = vmatpush1.msra.mxu0 0.0
    %378 = vmatprep.subr.mxu0 0.0
    %379 = vmatpush1.msra.mxu0 0.0
    %380 = vmatprep.subr.mxu0 0.0
    %381 = vmatpush1.msra.mxu0 0.0
    %382 = vmatprep.subr.mxu0 0.0
    %383 = vmatpush1.msra.mxu0 0.0
    %384 = vmatprep.subr.mxu0 0.0
    %385 = vmatpush1.msra.mxu0 0.0
    %386 = vmatprep.subr.mxu0 0.0
    %387 = vmatpush1.msra.mxu0 0.0
    %388 = vmatprep.subr.mxu0 0.0
    %389 = vmatpush1.msra.mxu0 0.0
    %390 = vmatprep.subr.mxu0 0.0
    %391 = vmatpush1.msra.mxu0 0.0
    %392 = vmatprep.subr.mxu0 0.0
    %393 = vmatpush1.msra.mxu0 0.0
    %394 = vmatprep.subr.mxu0 0.0
    %395 = vmatpush1.msra.mxu0 0.0
    %396 = vmatprep.subr.mxu0 0.0
    %397 = vmatpush1.msra.mxu0 0.0
    %398 = vmatprep.mubr.f32.mxu0 0.0
    %399 = vmatmul.mubr.f32.gmra.mrb[0].mxu0 %v332
    %v400 = vpop.f32.mrb[0].mxu0
    %v401 = vadd.f32 0.0, %v400
    %v402 = vpop.f32.mrb[0].mxu0
    %403 = vdwg.mxu0
    %s404 = scalar_lea.vmem [#allocation6], 96
    %v405 = vld [vmem:[%s404] sm:$0xff]
    %v406 = vld [vmem:[%s404 + $0x8] sm:$0xff]
    %s407 = scalar_lea.vmem [#allocation6], 112
    %v408 = vld [vmem:[%s407] sm:$0xff]
    %v409 = vld [vmem:[%s407 + $0x8] sm:$0xff]
    %v410 = vrot.slane %v163, 7
    %v411 = vsel %vm106, %v410, 0
    %413 = vmatprep.subr.mxu0 0.0
    %414 = vmatpush1.msra.mxu0 %v408
    %415 = vmatprep.subr.mxu0 0.0
    %416 = vmatpush1.msra.mxu0 %v409
    %417 = vmatprep.subr.mxu0 0.0
    %418 = vmatpush1.msra.mxu0 0.0
    %419 = vmatprep.subr.mxu0 0.0
    %420 = vmatpush1.msra.mxu0 0.0
    %421 = vmatprep.subr.mxu0 0.0
    %422 = vmatpush1.msra.mxu0 0.0
    %423 = vmatprep.subr.mxu0 0.0
    %424 = vmatpush1.msra.mxu0 0.0
    %425 = vmatprep.subr.mxu0 0.0
    %426 = vmatpush1.msra.mxu0 0.0
    %427 = vmatprep.subr.mxu0 0.0
    %428 = vmatpush1.msra.mxu0 0.0
    %429 = vmatprep.subr.mxu0 0.0
    %430 = vmatpush1.msra.mxu0 0.0
    %431 = vmatprep.subr.mxu0 0.0
    %432 = vmatpush1.msra.mxu0 0.0
    %433 = vmatprep.subr.mxu0 0.0
    %434 = vmatpush1.msra.mxu0 0.0
    %435 = vmatprep.subr.mxu0 0.0
    %436 = vmatpush1.msra.mxu0 0.0
    %437 = vmatprep.subr.mxu0 0.0
    %438 = vmatpush1.msra.mxu0 0.0
    %439 = vmatprep.subr.mxu0 0.0
    %440 = vmatpush1.msra.mxu0 0.0
    %441 = vmatprep.subr.mxu0 0.0
    %442 = vmatpush1.msra.mxu0 0.0
    %443 = vmatprep.subr.mxu0 0.0
    %444 = vmatpush1.msra.mxu0 0.0
    %445 = vmatprep.subr.mxu0 0.0
    %446 = vmatpush1.msra.mxu0 0.0
    %447 = vmatprep.subr.mxu0 0.0
    %448 = vmatpush1.msra.mxu0 0.0
    %449 = vmatprep.subr.mxu0 0.0
    %450 = vmatpush1.msra.mxu0 0.0
    %451 = vmatprep.subr.mxu0 0.0
    %452 = vmatpush1.msra.mxu0 0.0
    %453 = vmatprep.subr.mxu0 0.0
    %454 = vmatpush1.msra.mxu0 0.0
    %455 = vmatprep.subr.mxu0 0.0
    %456 = vmatpush1.msra.mxu0 0.0
    %457 = vmatprep.subr.mxu0 0.0
    %458 = vmatpush1.msra.mxu0 0.0
    %459 = vmatprep.subr.mxu0 0.0
    %460 = vmatpush1.msra.mxu0 0.0
    %461 = vmatprep.subr.mxu0 0.0
    %462 = vmatpush1.msra.mxu0 0.0
    %463 = vmatprep.subr.mxu0 0.0
    %464 = vmatpush1.msra.mxu0 0.0
    %465 = vmatprep.subr.mxu0 0.0
    %466 = vmatpush1.msra.mxu0 0.0
    %467 = vmatprep.subr.mxu0 0.0
    %468 = vmatpush1.msra.mxu0 0.0
    %469 = vmatprep.subr.mxu0 0.0
    %470 = vmatpush1.msra.mxu0 0.0
    %471 = vmatprep.subr.mxu0 0.0
    %472 = vmatpush1.msra.mxu0 0.0
    %473 = vmatprep.subr.mxu0 0.0
    %474 = vmatpush1.msra.mxu0 0.0
    %475 = vmatprep.subr.mxu0 0.0
    %476 = vmatpush1.msra.mxu0 0.0
    %477 = vmatprep.mubr.f32.mxu0 0.0
    %478 = vmatmul.mubr.f32.gmra.mrb[0].mxu0 %v411
    %v479 = vpop.f32.mrb[0].mxu0
    %v480 = vadd.f32 0.0, %v479
    %v481 = vpop.f32.mrb[0].mxu0
    %482 = vdwg.mxu0
    %s483 = scalar_lea.vmem [#allocation6], 128
    %v484 = vld [vmem:[%s483] sm:$0xff]
    %v485 = vld [vmem:[%s483 + $0x8] sm:$0xff]
    %s486 = scalar_lea.vmem [#allocation6], 144
    %v487 = vld [vmem:[%s486] sm:$0xff]
    %v488 = vld [vmem:[%s486 + $0x8] sm:$0xff]
    %v490 = vrot.slane %v164, 1
    %v491 = vsel %vm106, %v490, 0
    %493 = vmatprep.subr.mxu0 0.0
    %494 = vmatpush1.msra.mxu0 %v487
    %495 = vmatprep.subr.mxu0 0.0
    %496 = vmatpush1.msra.mxu0 %v488
    %497 = vmatprep.subr.mxu0 0.0
    %498 = vmatpush1.msra.mxu0 0.0
    %499 = vmatprep.subr.mxu0 0.0
    %500 = vmatpush1.msra.mxu0 0.0
    %501 = vmatprep.subr.mxu0 0.0
    %502 = vmatpush1.msra.mxu0 0.0
    %503 = vmatprep.subr.mxu0 0.0
    %504 = vmatpush1.msra.mxu0 0.0
    %505 = vmatprep.subr.mxu0 0.0
    %506 = vmatpush1.msra.mxu0 0.0
    %507 = vmatprep.subr.mxu0 0.0
    %508 = vmatpush1.msra.mxu0 0.0
    %509 = vmatprep.subr.mxu0 0.0
    %510 = vmatpush1.msra.mxu0 0.0
    %511 = vmatprep.subr.mxu0 0.0
    %512 = vmatpush1.msra.mxu0 0.0
    %513 = vmatprep.subr.mxu0 0.0
    %514 = vmatpush1.msra.mxu0 0.0
    %515 = vmatprep.subr.mxu0 0.0
    %516 = vmatpush1.msra.mxu0 0.0
    %517 = vmatprep.subr.mxu0 0.0
    %518 = vmatpush1.msra.mxu0 0.0
    %519 = vmatprep.subr.mxu0 0.0
    %520 = vmatpush1.msra.mxu0 0.0
    %521 = vmatprep.subr.mxu0 0.0
    %522 = vmatpush1.msra.mxu0 0.0
    %523 = vmatprep.subr.mxu0 0.0
    %524 = vmatpush1.msra.mxu0 0.0
    %525 = vmatprep.subr.mxu0 0.0
    %526 = vmatpush1.msra.mxu0 0.0
    %527 = vmatprep.subr.mxu0 0.0
    %528 = vmatpush1.msra.mxu0 0.0
    %529 = vmatprep.subr.mxu0 0.0
    %530 = vmatpush1.msra.mxu0 0.0
    %531 = vmatprep.subr.mxu0 0.0
    %532 = vmatpush1.msra.mxu0 0.0
    %533 = vmatprep.subr.mxu0 0.0
    %534 = vmatpush1.msra.mxu0 0.0
    %535 = vmatprep.subr.mxu0 0.0
    %536 = vmatpush1.msra.mxu0 0.0
    %537 = vmatprep.subr.mxu0 0.0
    %538 = vmatpush1.msra.mxu0 0.0
    %539 = vmatprep.subr.mxu0 0.0
    %540 = vmatpush1.msra.mxu0 0.0
    %541 = vmatprep.subr.mxu0 0.0
    %542 = vmatpush1.msra.mxu0 0.0
    %543 = vmatprep.subr.mxu0 0.0
    %544 = vmatpush1.msra.mxu0 0.0
    %545 = vmatprep.subr.mxu0 0.0
    %546 = vmatpush1.msra.mxu0 0.0
    %547 = vmatprep.subr.mxu0 0.0
    %548 = vmatpush1.msra.mxu0 0.0
    %549 = vmatprep.subr.mxu0 0.0
    %550 = vmatpush1.msra.mxu0 0.0
    %551 = vmatprep.subr.mxu0 0.0
    %552 = vmatpush1.msra.mxu0 0.0
    %553 = vmatprep.subr.mxu0 0.0
    %554 = vmatpush1.msra.mxu0 0.0
    %555 = vmatprep.subr.mxu0 0.0
    %556 = vmatpush1.msra.mxu0 0.0
    %557 = vmatprep.mubr.f32.mxu0 0.0
    %558 = vmatmul.mubr.f32.gmra.mrb[0].mxu0 %v491
    %v559 = vpop.f32.mrb[0].mxu0
    %v560 = vadd.f32 0.0, %v559
    %v561 = vpop.f32.mrb[0].mxu0
    %562 = vdwg.mxu0
    %s563 = scalar_lea.vmem [#allocation6], 160
    %v564 = vld [vmem:[%s563] sm:$0xff]
    %v565 = vld [vmem:[%s563 + $0x8] sm:$0xff]
    %s566 = scalar_lea.vmem [#allocation6], 176
    %v567 = vld [vmem:[%s566] sm:$0xff]
    %v568 = vld [vmem:[%s566 + $0x8] sm:$0xff]
    %v569 = vrot.slane %v164, 3
    %v570 = vsel %vm106, %v569, 0
    %572 = vmatprep.subr.mxu0 0.0
    %573 = vmatpush1.msra.mxu0 %v567
    %574 = vmatprep.subr.mxu0 0.0
    %575 = vmatpush1.msra.mxu0 %v568
    %576 = vmatprep.subr.mxu0 0.0
    %577 = vmatpush1.msra.mxu0 0.0
    %578 = vmatprep.subr.mxu0 0.0
    %579 = vmatpush1.msra.mxu0 0.0
    %580 = vmatprep.subr.mxu0 0.0
    %581 = vmatpush1.msra.mxu0 0.0
    %582 = vmatprep.subr.mxu0 0.0
    %583 = vmatpush1.msra.mxu0 0.0
    %584 = vmatprep.subr.mxu0 0.0
    %585 = vmatpush1.msra.mxu0 0.0
    %586 = vmatprep.subr.mxu0 0.0
    %587 = vmatpush1.msra.mxu0 0.0
    %588 = vmatprep.subr.mxu0 0.0
    %589 = vmatpush1.msra.mxu0 0.0
    %590 = vmatprep.subr.mxu0 0.0
    %591 = vmatpush1.msra.mxu0 0.0
    %592 = vmatprep.subr.mxu0 0.0
    %593 = vmatpush1.msra.mxu0 0.0
    %594 = vmatprep.subr.mxu0 0.0
    %595 = vmatpush1.msra.mxu0 0.0
    %596 = vmatprep.subr.mxu0 0.0
    %597 = vmatpush1.msra.mxu0 0.0
    %598 = vmatprep.subr.mxu0 0.0
    %599 = vmatpush1.msra.mxu0 0.0
    %600 = vmatprep.subr.mxu0 0.0
    %601 = vmatpush1.msra.mxu0 0.0
    %602 = vmatprep.subr.mxu0 0.0
    %603 = vmatpush1.msra.mxu0 0.0
    %604 = vmatprep.subr.mxu0 0.0
    %605 = vmatpush1.msra.mxu0 0.0
    %606 = vmatprep.subr.mxu0 0.0
    %607 = vmatpush1.msra.mxu0 0.0
    %608 = vmatprep.subr.mxu0 0.0
    %609 = vmatpush1.msra.mxu0 0.0
    %610 = vmatprep.subr.mxu0 0.0
    %611 = vmatpush1.msra.mxu0 0.0
    %612 = vmatprep.subr.mxu0 0.0
    %613 = vmatpush1.msra.mxu0 0.0
    %614 = vmatprep.subr.mxu0 0.0
    %615 = vmatpush1.msra.mxu0 0.0
    %616 = vmatprep.subr.mxu0 0.0
    %617 = vmatpush1.msra.mxu0 0.0
    %618 = vmatprep.subr.mxu0 0.0
    %619 = vmatpush1.msra.mxu0 0.0
    %620 = vmatprep.subr.mxu0 0.0
    %621 = vmatpush1.msra.mxu0 0.0
    %622 = vmatprep.subr.mxu0 0.0
    %623 = vmatpush1.msra.mxu0 0.0
    %624 = vmatprep.subr.mxu0 0.0
    %625 = vmatpush1.msra.mxu0 0.0
    %626 = vmatprep.subr.mxu0 0.0
    %627 = vmatpush1.msra.mxu0 0.0
    %628 = vmatprep.subr.mxu0 0.0
    %629 = vmatpush1.msra.mxu0 0.0
    %630 = vmatprep.subr.mxu0 0.0
    %631 = vmatpush1.msra.mxu0 0.0
    %632 = vmatprep.subr.mxu0 0.0
    %633 = vmatpush1.msra.mxu0 0.0
    %634 = vmatprep.subr.mxu0 0.0
    %635 = vmatpush1.msra.mxu0 0.0
    %636 = vmatprep.mubr.f32.mxu0 0.0
    %637 = vmatmul.mubr.f32.gmra.mrb[0].mxu0 %v570
    %v638 = vpop.f32.mrb[0].mxu0
    %v639 = vadd.f32 0.0, %v638
    %v640 = vpop.f32.mrb[0].mxu0
    %641 = vdwg.mxu0
    %s642 = scalar_lea.vmem [#allocation6], 192
    %v643 = vld [vmem:[%s642] sm:$0xff]
    %v644 = vld [vmem:[%s642 + $0x8] sm:$0xff]
    %s645 = scalar_lea.vmem [#allocation6], 208
    %v646 = vld [vmem:[%s645] sm:$0xff]
    %v647 = vld [vmem:[%s645 + $0x8] sm:$0xff]
    %v648 = vrot.slane %v164, 5
    %v649 = vsel %vm106, %v648, 0
    %651 = vmatprep.subr.mxu0 0.0
    %652 = vmatpush1.msra.mxu0 %v646
    %653 = vmatprep.subr.mxu0 0.0
    %654 = vmatpush1.msra.mxu0 %v647
    %655 = vmatprep.subr.mxu0 0.0
    %656 = vmatpush1.msra.mxu0 0.0
    %657 = vmatprep.subr.mxu0 0.0
    %658 = vmatpush1.msra.mxu0 0.0
    %659 = vmatprep.subr.mxu0 0.0
    %660 = vmatpush1.msra.mxu0 0.0
    %661 = vmatprep.subr.mxu0 0.0
    %662 = vmatpush1.msra.mxu0 0.0
    %663 = vmatprep.subr.mxu0 0.0
    %664 = vmatpush1.msra.mxu0 0.0
    %665 = vmatprep.subr.mxu0 0.0
    %666 = vmatpush1.msra.mxu0 0.0
    %667 = vmatprep.subr.mxu0 0.0
    %668 = vmatpush1.msra.mxu0 0.0
    %669 = vmatprep.subr.mxu0 0.0
    %670 = vmatpush1.msra.mxu0 0.0
    %671 = vmatprep.subr.mxu0 0.0
    %672 = vmatpush1.msra.mxu0 0.0
    %673 = vmatprep.subr.mxu0 0.0
    %674 = vmatpush1.msra.mxu0 0.0
    %675 = vmatprep.subr.mxu0 0.0
    %676 = vmatpush1.msra.mxu0 0.0
    %677 = vmatprep.subr.mxu0 0.0
    %678 = vmatpush1.msra.mxu0 0.0
    %679 = vmatprep.subr.mxu0 0.0
    %680 = vmatpush1.msra.mxu0 0.0
    %681 = vmatprep.subr.mxu0 0.0
    %682 = vmatpush1.msra.mxu0 0.0
    %683 = vmatprep.subr.mxu0 0.0
    %684 = vmatpush1.msra.mxu0 0.0
    %685 = vmatprep.subr.mxu0 0.0
    %686 = vmatpush1.msra.mxu0 0.0
    %687 = vmatprep.subr.mxu0 0.0
    %688 = vmatpush1.msra.mxu0 0.0
    %689 = vmatprep.subr.mxu0 0.0
    %690 = vmatpush1.msra.mxu0 0.0
    %691 = vmatprep.subr.mxu0 0.0
    %692 = vmatpush1.msra.mxu0 0.0
    %693 = vmatprep.subr.mxu0 0.0
    %694 = vmatpush1.msra.mxu0 0.0
    %695 = vmatprep.subr.mxu0 0.0
    %696 = vmatpush1.msra.mxu0 0.0
    %697 = vmatprep.subr.mxu0 0.0
    %698 = vmatpush1.msra.mxu0 0.0
    %699 = vmatprep.subr.mxu0 0.0
    %700 = vmatpush1.msra.mxu0 0.0
    %701 = vmatprep.subr.mxu0 0.0
    %702 = vmatpush1.msra.mxu0 0.0
    %703 = vmatprep.subr.mxu0 0.0
    %704 = vmatpush1.msra.mxu0 0.0
    %705 = vmatprep.subr.mxu0 0.0
    %706 = vmatpush1.msra.mxu0 0.0
    %707 = vmatprep.subr.mxu0 0.0
    %708 = vmatpush1.msra.mxu0 0.0
    %709 = vmatprep.subr.mxu0 0.0
    %710 = vmatpush1.msra.mxu0 0.0
    %711 = vmatprep.subr.mxu0 0.0
    %712 = vmatpush1.msra.mxu0 0.0
    %713 = vmatprep.subr.mxu0 0.0
    %714 = vmatpush1.msra.mxu0 0.0
    %715 = vmatprep.mubr.f32.mxu0 0.0
    %716 = vmatmul.mubr.f32.gmra.mrb[0].mxu0 %v649
    %v717 = vpop.f32.mrb[0].mxu0
    %v718 = vadd.f32 0.0, %v717
    %v719 = vpop.f32.mrb[0].mxu0
    %720 = vdwg.mxu0
    %s721 = scalar_lea.vmem [#allocation6], 224
    %v722 = vld [vmem:[%s721] sm:$0xff]
    %v723 = vld [vmem:[%s721 + $0x8] sm:$0xff]
    %s724 = scalar_lea.vmem [#allocation6], 240
    %v725 = vld [vmem:[%s724] sm:$0xff]
    %v726 = vld [vmem:[%s724 + $0x8] sm:$0xff]
    %v727 = vrot.slane %v164, 7
    %v728 = vsel %vm106, %v727, 0
    %730 = vmatprep.subr.mxu0 0.0
    %731 = vmatpush1.msra.mxu0 %v725
    %732 = vmatprep.subr.mxu0 0.0
    %733 = vmatpush1.msra.mxu0 %v726
    %734 = vmatprep.subr.mxu0 0.0
    %735 = vmatpush1.msra.mxu0 0.0
    %736 = vmatprep.subr.mxu0 0.0
    %737 = vmatpush1.msra.mxu0 0.0
    %738 = vmatprep.subr.mxu0 0.0
    %739 = vmatpush1.msra.mxu0 0.0
    %740 = vmatprep.subr.mxu0 0.0
    %741 = vmatpush1.msra.mxu0 0.0
    %742 = vmatprep.subr.mxu0 0.0
    %743 = vmatpush1.msra.mxu0 0.0
    %744 = vmatprep.subr.mxu0 0.0
    %745 = vmatpush1.msra.mxu0 0.0
    %746 = vmatprep.subr.mxu0 0.0
    %747 = vmatpush1.msra.mxu0 0.0
    %748 = vmatprep.subr.mxu0 0.0
    %749 = vmatpush1.msra.mxu0 0.0
    %750 = vmatprep.subr.mxu0 0.0
    %751 = vmatpush1.msra.mxu0 0.0
    %752 = vmatprep.subr.mxu0 0.0
    %753 = vmatpush1.msra.mxu0 0.0
    %754 = vmatprep.subr.mxu0 0.0
    %755 = vmatpush1.msra.mxu0 0.0
    %756 = vmatprep.subr.mxu0 0.0
    %757 = vmatpush1.msra.mxu0 0.0
    %758 = vmatprep.subr.mxu0 0.0
    %759 = vmatpush1.msra.mxu0 0.0
    %760 = vmatprep.subr.mxu0 0.0
    %761 = vmatpush1.msra.mxu0 0.0
    %762 = vmatprep.subr.mxu0 0.0
    %763 = vmatpush1.msra.mxu0 0.0
    %764 = vmatprep.subr.mxu0 0.0
    %765 = vmatpush1.msra.mxu0 0.0
    %766 = vmatprep.subr.mxu0 0.0
    %767 = vmatpush1.msra.mxu0 0.0
    %768 = vmatprep.subr.mxu0 0.0
    %769 = vmatpush1.msra.mxu0 0.0
    %770 = vmatprep.subr.mxu0 0.0
    %771 = vmatpush1.msra.mxu0 0.0
    %772 = vmatprep.subr.mxu0 0.0
    %773 = vmatpush1.msra.mxu0 0.0
    %774 = vmatprep.subr.mxu0 0.0
    %775 = vmatpush1.msra.mxu0 0.0
    %776 = vmatprep.subr.mxu0 0.0
    %777 = vmatpush1.msra.mxu0 0.0
    %778 = vmatprep.subr.mxu0 0.0
    %779 = vmatpush1.msra.mxu0 0.0
    %780 = vmatprep.subr.mxu0 0.0
    %781 = vmatpush1.msra.mxu0 0.0
    %782 = vmatprep.subr.mxu0 0.0
    %783 = vmatpush1.msra.mxu0 0.0
    %784 = vmatprep.subr.mxu0 0.0
    %785 = vmatpush1.msra.mxu0 0.0
    %786 = vmatprep.subr.mxu0 0.0
    %787 = vmatpush1.msra.mxu0 0.0
    %788 = vmatprep.subr.mxu0 0.0
    %789 = vmatpush1.msra.mxu0 0.0
    %790 = vmatprep.subr.mxu0 0.0
    %791 = vmatpush1.msra.mxu0 0.0
    %792 = vmatprep.subr.mxu0 0.0
    %793 = vmatpush1.msra.mxu0 0.0
    %794 = vmatprep.mubr.f32.mxu0 0.0
    %795 = vmatmul.mubr.f32.gmra.mrb[0].mxu0 %v728
    %v796 = vpop.f32.mrb[0].mxu0
    %v797 = vadd.f32 0.0, %v796
    %v798 = vpop.f32.mrb[0].mxu0
    %799 = vdwg.mxu0
    %v800 = vsel %vm106, %v163, 0
    %802 = vmatprep.subr.mxu0 0.0
    %803 = vmatpush1.msra.mxu0 %v167
    %804 = vmatprep.subr.mxu0 0.0
    %805 = vmatpush1.msra.mxu0 %v168
    %806 = vmatprep.subr.mxu0 0.0
    %807 = vmatpush1.msra.mxu0 0.0
    %808 = vmatprep.subr.mxu0 0.0
    %809 = vmatpush1.msra.mxu0 0.0
    %810 = vmatprep.subr.mxu0 0.0
    %811 = vmatpush1.msra.mxu0 0.0
    %812 = vmatprep.subr.mxu0 0.0
    %813 = vmatpush1.msra.mxu0 0.0
    %814 = vmatprep.subr.mxu0 0.0
    %815 = vmatpush1.msra.mxu0 0.0
    %816 = vmatprep.subr.mxu0 0.0
    %817 = vmatpush1.msra.mxu0 0.0
    %818 = vmatprep.subr.mxu0 0.0
    %819 = vmatpush1.msra.mxu0 0.0
    %820 = vmatprep.subr.mxu0 0.0
    %821 = vmatpush1.msra.mxu0 0.0
    %822 = vmatprep.subr.mxu0 0.0
    %823 = vmatpush1.msra.mxu0 0.0
    %824 = vmatprep.subr.mxu0 0.0
    %825 = vmatpush1.msra.mxu0 0.0
    %826 = vmatprep.subr.mxu0 0.0
    %827 = vmatpush1.msra.mxu0 0.0
    %828 = vmatprep.subr.mxu0 0.0
    %829 = vmatpush1.msra.mxu0 0.0
    %830 = vmatprep.subr.mxu0 0.0
    %831 = vmatpush1.msra.mxu0 0.0
    %832 = vmatprep.subr.mxu0 0.0
    %833 = vmatpush1.msra.mxu0 0.0
    %834 = vmatprep.subr.mxu0 0.0
    %835 = vmatpush1.msra.mxu0 0.0
    %836 = vmatprep.subr.mxu0 0.0
    %837 = vmatpush1.msra.mxu0 0.0
    %838 = vmatprep.subr.mxu0 0.0
    %839 = vmatpush1.msra.mxu0 0.0
    %840 = vmatprep.subr.mxu0 0.0
    %841 = vmatpush1.msra.mxu0 0.0
    %842 = vmatprep.subr.mxu0 0.0
    %843 = vmatpush1.msra.mxu0 0.0
    %844 = vmatprep.subr.mxu0 0.0
    %845 = vmatpush1.msra.mxu0 0.0
    %846 = vmatprep.subr.mxu0 0.0
    %847 = vmatpush1.msra.mxu0 0.0
    %848 = vmatprep.subr.mxu0 0.0
    %849 = vmatpush1.msra.mxu0 0.0
    %850 = vmatprep.subr.mxu0 0.0
    %851 = vmatpush1.msra.mxu0 0.0
    %852 = vmatprep.subr.mxu0 0.0
    %853 = vmatpush1.msra.mxu0 0.0
    %854 = vmatprep.subr.mxu0 0.0
    %855 = vmatpush1.msra.mxu0 0.0
    %856 = vmatprep.subr.mxu0 0.0
    %857 = vmatpush1.msra.mxu0 0.0
    %858 = vmatprep.subr.mxu0 0.0
    %859 = vmatpush1.msra.mxu0 0.0
    %860 = vmatprep.subr.mxu0 0.0
    %861 = vmatpush1.msra.mxu0 0.0
    %862 = vmatprep.subr.mxu0 0.0
    %863 = vmatpush1.msra.mxu0 0.0
    %864 = vmatprep.subr.mxu0 0.0
    %865 = vmatpush1.msra.mxu0 0.0
    %866 = vmatprep.mubr.f32.mxu0 0.0
    %867 = vmatmul.mubr.f32.gmra.mrb[0].mxu0 %v800
    %v868 = vpop.f32.mrb[0].mxu0
    %v869 = vadd.f32 %v243, %v868
    %v870 = vpop.f32.mrb[0].mxu0
    %871 = vdwg.mxu0
    %v872 = vrot.slane %v163, 2
    %v873 = vsel %vm106, %v872, 0
    %875 = vmatprep.subr.mxu0 0.0
    %876 = vmatpush1.msra.mxu0 %v247
    %877 = vmatprep.subr.mxu0 0.0
    %878 = vmatpush1.msra.mxu0 %v248
    %879 = vmatprep.subr.mxu0 0.0
    %880 = vmatpush1.msra.mxu0 0.0
    %881 = vmatprep.subr.mxu0 0.0
    %882 = vmatpush1.msra.mxu0 0.0
    %883 = vmatprep.subr.mxu0 0.0
    %884 = vmatpush1.msra.mxu0 0.0
    %885 = vmatprep.subr.mxu0 0.0
    %886 = vmatpush1.msra.mxu0 0.0
    %887 = vmatprep.subr.mxu0 0.0
    %888 = vmatpush1.msra.mxu0 0.0
    %889 = vmatprep.subr.mxu0 0.0
    %890 = vmatpush1.msra.mxu0 0.0
    %891 = vmatprep.subr.mxu0 0.0
    %892 = vmatpush1.msra.mxu0 0.0
    %893 = vmatprep.subr.mxu0 0.0
    %894 = vmatpush1.msra.mxu0 0.0
    %895 = vmatprep.subr.mxu0 0.0
    %896 = vmatpush1.msra.mxu0 0.0
    %897 = vmatprep.subr.mxu0 0.0
    %898 = vmatpush1.msra.mxu0 0.0
    %899 = vmatprep.subr.mxu0 0.0
    %900 = vmatpush1.msra.mxu0 0.0
    %901 = vmatprep.subr.mxu0 0.0
    %902 = vmatpush1.msra.mxu0 0.0
    %903 = vmatprep.subr.mxu0 0.0
    %904 = vmatpush1.msra.mxu0 0.0
    %905 = vmatprep.subr.mxu0 0.0
    %906 = vmatpush1.msra.mxu0 0.0
    %907 = vmatprep.subr.mxu0 0.0
    %908 = vmatpush1.msra.mxu0 0.0
    %909 = vmatprep.subr.mxu0 0.0
    %910 = vmatpush1.msra.mxu0 0.0
    %911 = vmatprep.subr.mxu0 0.0
    %912 = vmatpush1.msra.mxu0 0.0
    %913 = vmatprep.subr.mxu0 0.0
    %914 = vmatpush1.msra.mxu0 0.0
    %915 = vmatprep.subr.mxu0 0.0
    %916 = vmatpush1.msra.mxu0 0.0
    %917 = vmatprep.subr.mxu0 0.0
    %918 = vmatpush1.msra.mxu0 0.0
    %919 = vmatprep.subr.mxu0 0.0
    %920 = vmatpush1.msra.mxu0 0.0
    %921 = vmatprep.subr.mxu0 0.0
    %922 = vmatpush1.msra.mxu0 0.0
    %923 = vmatprep.subr.mxu0 0.0
    %924 = vmatpush1.msra.mxu0 0.0
    %925 = vmatprep.subr.mxu0 0.0
    %926 = vmatpush1.msra.mxu0 0.0
    %927 = vmatprep.subr.mxu0 0.0
    %928 = vmatpush1.msra.mxu0 0.0
    %929 = vmatprep.subr.mxu0 0.0
    %930 = vmatpush1.msra.mxu0 0.0
    %931 = vmatprep.subr.mxu0 0.0
    %932 = vmatpush1.msra.mxu0 0.0
    %933 = vmatprep.subr.mxu0 0.0
    %934 = vmatpush1.msra.mxu0 0.0
    %935 = vmatprep.subr.mxu0 0.0
    %936 = vmatpush1.msra.mxu0 0.0
    %937 = vmatprep.subr.mxu0 0.0
    %938 = vmatpush1.msra.mxu0 0.0
    %939 = vmatprep.mubr.f32.mxu0 0.0
    %940 = vmatmul.mubr.f32.gmra.mrb[0].mxu0 %v873
    %v941 = vpop.f32.mrb[0].mxu0
    %v942 = vadd.f32 %v322, %v941
    %v943 = vpop.f32.mrb[0].mxu0
    %944 = vdwg.mxu0
    %v945 = vrot.slane %v163, 4
    %v946 = vsel %vm106, %v945, 0
    %948 = vmatprep.subr.mxu0 0.0
    %949 = vmatpush1.msra.mxu0 %v326
    %950 = vmatprep.subr.mxu0 0.0
    %951 = vmatpush1.msra.mxu0 %v327
    %952 = vmatprep.subr.mxu0 0.0
    %953 = vmatpush1.msra.mxu0 0.0
    %954 = vmatprep.subr.mxu0 0.0
    %955 = vmatpush1.msra.mxu0 0.0
    %956 = vmatprep.subr.mxu0 0.0
    %957 = vmatpush1.msra.mxu0 0.0
    %958 = vmatprep.subr.mxu0 0.0
    %959 = vmatpush1.msra.mxu0 0.0
    %960 = vmatprep.subr.mxu0 0.0
    %961 = vmatpush1.msra.mxu0 0.0
    %962 = vmatprep.subr.mxu0 0.0
    %963 = vmatpush1.msra.mxu0 0.0
    %964 = vmatprep.subr.mxu0 0.0
    %965 = vmatpush1.msra.mxu0 0.0
    %966 = vmatprep.subr.mxu0 0.0
    %967 = vmatpush1.msra.mxu0 0.0
    %968 = vmatprep.subr.mxu0 0.0
    %969 = vmatpush1.msra.mxu0 0.0
    %970 = vmatprep.subr.mxu0 0.0
    %971 = vmatpush1.msra.mxu0 0.0
    %972 = vmatprep.subr.mxu0 0.0
    %973 = vmatpush1.msra.mxu0 0.0
    %974 = vmatprep.subr.mxu0 0.0
    %975 = vmatpush1.msra.mxu0 0.0
    %976 = vmatprep.subr.mxu0 0.0
    %977 = vmatpush1.msra.mxu0 0.0
    %978 = vmatprep.subr.mxu0 0.0
    %979 = vmatpush1.msra.mxu0 0.0
    %980 = vmatprep.subr.mxu0 0.0
    %981 = vmatpush1.msra.mxu0 0.0
    %982 = vmatprep.subr.mxu0 0.0
    %983 = vmatpush1.msra.mxu0 0.0
    %984 = vmatprep.subr.mxu0 0.0
    %985 = vmatpush1.msra.mxu0 0.0
    %986 = vmatprep.subr.mxu0 0.0
    %987 = vmatpush1.msra.mxu0 0.0
    %988 = vmatprep.subr.mxu0 0.0
    %989 = vmatpush1.msra.mxu0 0.0
    %990 = vmatprep.subr.mxu0 0.0
    %991 = vmatpush1.msra.mxu0 0.0
    %992 = vmatprep.subr.mxu0 0.0
    %993 = vmatpush1.msra.mxu0 0.0
    %994 = vmatprep.subr.mxu0 0.0
    %995 = vmatpush1.msra.mxu0 0.0
    %996 = vmatprep.subr.mxu0 0.0
    %997 = vmatpush1.msra.mxu0 0.0
    %998 = vmatprep.subr.mxu0 0.0
    %999 = vmatpush1.msra.mxu0 0.0
    %1000 = vmatprep.subr.mxu0 0.0
    %1001 = vmatpush1.msra.mxu0 0.0
    %1002 = vmatprep.subr.mxu0 0.0
    %1003 = vmatpush1.msra.mxu0 0.0
    %1004 = vmatprep.subr.mxu0 0.0
    %1005 = vmatpush1.msra.mxu0 0.0
    %1006 = vmatprep.subr.mxu0 0.0
    %1007 = vmatpush1.msra.mxu0 0.0
    %1008 = vmatprep.subr.mxu0 0.0
    %1009 = vmatpush1.msra.mxu0 0.0
    %1010 = vmatprep.subr.mxu0 0.0
    %1011 = vmatpush1.msra.mxu0 0.0
    %1012 = vmatprep.mubr.f32.mxu0 0.0
    %1013 = vmatmul.mubr.f32.gmra.mrb[0].mxu0 %v946
    %v1014 = vpop.f32.mrb[0].mxu0
    %v1015 = vadd.f32 %v401, %v1014
    %v1016 = vpop.f32.mrb[0].mxu0
    %1017 = vdwg.mxu0
    %v1018 = vrot.slane %v163, 6
    %v1019 = vsel %vm106, %v1018, 0
    %1021 = vmatprep.subr.mxu0 0.0
    %1022 = vmatpush1.msra.mxu0 %v405
    %1023 = vmatprep.subr.mxu0 0.0
    %1024 = vmatpush1.msra.mxu0 %v406
    %1025 = vmatprep.subr.mxu0 0.0
    %1026 = vmatpush1.msra.mxu0 0.0
    %1027 = vmatprep.subr.mxu0 0.0
    %1028 = vmatpush1.msra.mxu0 0.0
    %1029 = vmatprep.subr.mxu0 0.0
    %1030 = vmatpush1.msra.mxu0 0.0
    %1031 = vmatprep.subr.mxu0 0.0
    %1032 = vmatpush1.msra.mxu0 0.0
    %1033 = vmatprep.subr.mxu0 0.0
    %1034 = vmatpush1.msra.mxu0 0.0
    %1035 = vmatprep.subr.mxu0 0.0
    %1036 = vmatpush1.msra.mxu0 0.0
    %1037 = vmatprep.subr.mxu0 0.0
    %1038 = vmatpush1.msra.mxu0 0.0
    %1039 = vmatprep.subr.mxu0 0.0
    %1040 = vmatpush1.msra.mxu0 0.0
    %1041 = vmatprep.subr.mxu0 0.0
    %1042 = vmatpush1.msra.mxu0 0.0
    %1043 = vmatprep.subr.mxu0 0.0
    %1044 = vmatpush1.msra.mxu0 0.0
    %1045 = vmatprep.subr.mxu0 0.0
    %1046 = vmatpush1.msra.mxu0 0.0
    %1047 = vmatprep.subr.mxu0 0.0
    %1048 = vmatpush1.msra.mxu0 0.0
    %1049 = vmatprep.subr.mxu0 0.0
    %1050 = vmatpush1.msra.mxu0 0.0
    %1051 = vmatprep.subr.mxu0 0.0
    %1052 = vmatpush1.msra.mxu0 0.0
    %1053 = vmatprep.subr.mxu0 0.0
    %1054 = vmatpush1.msra.mxu0 0.0
    %1055 = vmatprep.subr.mxu0 0.0
    %1056 = vmatpush1.msra.mxu0 0.0
    %1057 = vmatprep.subr.mxu0 0.0
    %1058 = vmatpush1.msra.mxu0 0.0
    %1059 = vmatprep.subr.mxu0 0.0
    %1060 = vmatpush1.msra.mxu0 0.0
    %1061 = vmatprep.subr.mxu0 0.0
    %1062 = vmatpush1.msra.mxu0 0.0
    %1063 = vmatprep.subr.mxu0 0.0
    %1064 = vmatpush1.msra.mxu0 0.0
    %1065 = vmatprep.subr.mxu0 0.0
    %1066 = vmatpush1.msra.mxu0 0.0
    %1067 = vmatprep.subr.mxu0 0.0
    %1068 = vmatpush1.msra.mxu0 0.0
    %1069 = vmatprep.subr.mxu0 0.0
    %1070 = vmatpush1.msra.mxu0 0.0
    %1071 = vmatprep.subr.mxu0 0.0
    %1072 = vmatpush1.msra.mxu0 0.0
    %1073 = vmatprep.subr.mxu0 0.0
    %1074 = vmatpush1.msra.mxu0 0.0
    %1075 = vmatprep.subr.mxu0 0.0
    %1076 = vmatpush1.msra.mxu0 0.0
    %1077 = vmatprep.subr.mxu0 0.0
    %1078 = vmatpush1.msra.mxu0 0.0
    %1079 = vmatprep.subr.mxu0 0.0
    %1080 = vmatpush1.msra.mxu0 0.0
    %1081 = vmatprep.subr.mxu0 0.0
    %1082 = vmatpush1.msra.mxu0 0.0
    %1083 = vmatprep.subr.mxu0 0.0
    %1084 = vmatpush1.msra.mxu0 0.0
    %1085 = vmatprep.mubr.f32.mxu0 0.0
    %1086 = vmatmul.mubr.f32.gmra.mrb[0].mxu0 %v1019
    %v1087 = vpop.f32.mrb[0].mxu0
    %v1088 = vadd.f32 %v480, %v1087
    %v1089 = vpop.f32.mrb[0].mxu0
    %1090 = vdwg.mxu0
    %v1091 = vsel %vm106, %v164, 0
    %1093 = vmatprep.subr.mxu0 0.0
    %1094 = vmatpush1.msra.mxu0 %v484
    %1095 = vmatprep.subr.mxu0 0.0
    %1096 = vmatpush1.msra.mxu0 %v485
    %1097 = vmatprep.subr.mxu0 0.0
    %1098 = vmatpush1.msra.mxu0 0.0
    %1099 = vmatprep.subr.mxu0 0.0
    %1100 = vmatpush1.msra.mxu0 0.0
    %1101 = vmatprep.subr.mxu0 0.0
    %1102 = vmatpush1.msra.mxu0 0.0
    %1103 = vmatprep.subr.mxu0 0.0
    %1104 = vmatpush1.msra.mxu0 0.0
    %1105 = vmatprep.subr.mxu0 0.0
    %1106 = vmatpush1.msra.mxu0 0.0
    %1107 = vmatprep.subr.mxu0 0.0
    %1108 = vmatpush1.msra.mxu0 0.0
    %1109 = vmatprep.subr.mxu0 0.0
    %1110 = vmatpush1.msra.mxu0 0.0
    %1111 = vmatprep.subr.mxu0 0.0
    %1112 = vmatpush1.msra.mxu0 0.0
    %1113 = vmatprep.subr.mxu0 0.0
    %1114 = vmatpush1.msra.mxu0 0.0
    %1115 = vmatprep.subr.mxu0 0.0
    %1116 = vmatpush1.msra.mxu0 0.0
    %1117 = vmatprep.subr.mxu0 0.0
    %1118 = vmatpush1.msra.mxu0 0.0
    %1119 = vmatprep.subr.mxu0 0.0
    %1120 = vmatpush1.msra.mxu0 0.0
    %1121 = vmatprep.subr.mxu0 0.0
    %1122 = vmatpush1.msra.mxu0 0.0
    %1123 = vmatprep.subr.mxu0 0.0
    %1124 = vmatpush1.msra.mxu0 0.0
    %1125 = vmatprep.subr.mxu0 0.0
    %1126 = vmatpush1.msra.mxu0 0.0
    %1127 = vmatprep.subr.mxu0 0.0
    %1128 = vmatpush1.msra.mxu0 0.0
    %1129 = vmatprep.subr.mxu0 0.0
    %1130 = vmatpush1.msra.mxu0 0.0
    %1131 = vmatprep.subr.mxu0 0.0
    %1132 = vmatpush1.msra.mxu0 0.0
    %1133 = vmatprep.subr.mxu0 0.0
    %1134 = vmatpush1.msra.mxu0 0.0
    %1135 = vmatprep.subr.mxu0 0.0
    %1136 = vmatpush1.msra.mxu0 0.0
    %1137 = vmatprep.subr.mxu0 0.0
    %1138 = vmatpush1.msra.mxu0 0.0
    %1139 = vmatprep.subr.mxu0 0.0
    %1140 = vmatpush1.msra.mxu0 0.0
    %1141 = vmatprep.subr.mxu0 0.0
    %1142 = vmatpush1.msra.mxu0 0.0
    %1143 = vmatprep.subr.mxu0 0.0
    %1144 = vmatpush1.msra.mxu0 0.0
    %1145 = vmatprep.subr.mxu0 0.0
    %1146 = vmatpush1.msra.mxu0 0.0
    %1147 = vmatprep.subr.mxu0 0.0
    %1148 = vmatpush1.msra.mxu0 0.0
    %1149 = vmatprep.subr.mxu0 0.0
    %1150 = vmatpush1.msra.mxu0 0.0
    %1151 = vmatprep.subr.mxu0 0.0
    %1152 = vmatpush1.msra.mxu0 0.0
    %1153 = vmatprep.subr.mxu0 0.0
    %1154 = vmatpush1.msra.mxu0 0.0
    %1155 = vmatprep.subr.mxu0 0.0
    %1156 = vmatpush1.msra.mxu0 0.0
    %1157 = vmatprep.mubr.f32.mxu0 0.0
    %1158 = vmatmul.mubr.f32.gmra.mrb[0].mxu0 %v1091
    %v1159 = vpop.f32.mrb[0].mxu0
    %v1160 = vadd.f32 %v560, %v1159
    %v1161 = vpop.f32.mrb[0].mxu0
    %1162 = vdwg.mxu0
    %v1163 = vrot.slane %v164, 2
    %v1164 = vsel %vm106, %v1163, 0
    %1166 = vmatprep.subr.mxu0 0.0
    %1167 = vmatpush1.msra.mxu0 %v564
    %1168 = vmatprep.subr.mxu0 0.0
    %1169 = vmatpush1.msra.mxu0 %v565
    %1170 = vmatprep.subr.mxu0 0.0
    %1171 = vmatpush1.msra.mxu0 0.0
    %1172 = vmatprep.subr.mxu0 0.0
    %1173 = vmatpush1.msra.mxu0 0.0
    %1174 = vmatprep.subr.mxu0 0.0
    %1175 = vmatpush1.msra.mxu0 0.0
    %1176 = vmatprep.subr.mxu0 0.0
    %1177 = vmatpush1.msra.mxu0 0.0
    %1178 = vmatprep.subr.mxu0 0.0
    %1179 = vmatpush1.msra.mxu0 0.0
    %1180 = vmatprep.subr.mxu0 0.0
    %1181 = vmatpush1.msra.mxu0 0.0
    %1182 = vmatprep.subr.mxu0 0.0
    %1183 = vmatpush1.msra.mxu0 0.0
    %1184 = vmatprep.subr.mxu0 0.0
    %1185 = vmatpush1.msra.mxu0 0.0
    %1186 = vmatprep.subr.mxu0 0.0
    %1187 = vmatpush1.msra.mxu0 0.0
    %1188 = vmatprep.subr.mxu0 0.0
    %1189 = vmatpush1.msra.mxu0 0.0
    %1190 = vmatprep.subr.mxu0 0.0
    %1191 = vmatpush1.msra.mxu0 0.0
    %1192 = vmatprep.subr.mxu0 0.0
    %1193 = vmatpush1.msra.mxu0 0.0
    %1194 = vmatprep.subr.mxu0 0.0
    %1195 = vmatpush1.msra.mxu0 0.0
    %1196 = vmatprep.subr.mxu0 0.0
    %1197 = vmatpush1.msra.mxu0 0.0
    %1198 = vmatprep.subr.mxu0 0.0
    %1199 = vmatpush1.msra.mxu0 0.0
    %1200 = vmatprep.subr.mxu0 0.0
    %1201 = vmatpush1.msra.mxu0 0.0
    %1202 = vmatprep.subr.mxu0 0.0
    %1203 = vmatpush1.msra.mxu0 0.0
    %1204 = vmatprep.subr.mxu0 0.0
    %1205 = vmatpush1.msra.mxu0 0.0
    %1206 = vmatprep.subr.mxu0 0.0
    %1207 = vmatpush1.msra.mxu0 0.0
    %1208 = vmatprep.subr.mxu0 0.0
    %1209 = vmatpush1.msra.mxu0 0.0
    %1210 = vmatprep.subr.mxu0 0.0
    %1211 = vmatpush1.msra.mxu0 0.0
    %1212 = vmatprep.subr.mxu0 0.0
    %1213 = vmatpush1.msra.mxu0 0.0
    %1214 = vmatprep.subr.mxu0 0.0
    %1215 = vmatpush1.msra.mxu0 0.0
    %1216 = vmatprep.subr.mxu0 0.0
    %1217 = vmatpush1.msra.mxu0 0.0
    %1218 = vmatprep.subr.mxu0 0.0
    %1219 = vmatpush1.msra.mxu0 0.0
    %1220 = vmatprep.subr.mxu0 0.0
    %1221 = vmatpush1.msra.mxu0 0.0
    %1222 = vmatprep.subr.mxu0 0.0
    %1223 = vmatpush1.msra.mxu0 0.0
    %1224 = vmatprep.subr.mxu0 0.0
    %1225 = vmatpush1.msra.mxu0 0.0
    %1226 = vmatprep.subr.mxu0 0.0
    %1227 = vmatpush1.msra.mxu0 0.0
    %1228 = vmatprep.subr.mxu0 0.0
    %1229 = vmatpush1.msra.mxu0 0.0
    %1230 = vmatprep.mubr.f32.mxu0 0.0
    %1231 = vmatmul.mubr.f32.gmra.mrb[0].mxu0 %v1164
    %v1232 = vpop.f32.mrb[0].mxu0
    %v1233 = vadd.f32 %v639, %v1232
    %v1234 = vpop.f32.mrb[0].mxu0
    %1235 = vdwg.mxu0
    %v1236 = vrot.slane %v164, 4
    %v1237 = vsel %vm106, %v1236, 0
    %1239 = vmatprep.subr.mxu0 0.0
    %1240 = vmatpush1.msra.mxu0 %v643
    %1241 = vmatprep.subr.mxu0 0.0
    %1242 = vmatpush1.msra.mxu0 %v644
    %1243 = vmatprep.subr.mxu0 0.0
    %1244 = vmatpush1.msra.mxu0 0.0
    %1245 = vmatprep.subr.mxu0 0.0
    %1246 = vmatpush1.msra.mxu0 0.0
    %1247 = vmatprep.subr.mxu0 0.0
    %1248 = vmatpush1.msra.mxu0 0.0
    %1249 = vmatprep.subr.mxu0 0.0
    %1250 = vmatpush1.msra.mxu0 0.0
    %1251 = vmatprep.subr.mxu0 0.0
    %1252 = vmatpush1.msra.mxu0 0.0
    %1253 = vmatprep.subr.mxu0 0.0
    %1254 = vmatpush1.msra.mxu0 0.0
    %1255 = vmatprep.subr.mxu0 0.0
    %1256 = vmatpush1.msra.mxu0 0.0
    %1257 = vmatprep.subr.mxu0 0.0
    %1258 = vmatpush1.msra.mxu0 0.0
    %1259 = vmatprep.subr.mxu0 0.0
    %1260 = vmatpush1.msra.mxu0 0.0
    %1261 = vmatprep.subr.mxu0 0.0
    %1262 = vmatpush1.msra.mxu0 0.0
    %1263 = vmatprep.subr.mxu0 0.0
    %1264 = vmatpush1.msra.mxu0 0.0
    %1265 = vmatprep.subr.mxu0 0.0
    %1266 = vmatpush1.msra.mxu0 0.0
    %1267 = vmatprep.subr.mxu0 0.0
    %1268 = vmatpush1.msra.mxu0 0.0
    %1269 = vmatprep.subr.mxu0 0.0
    %1270 = vmatpush1.msra.mxu0 0.0
    %1271 = vmatprep.subr.mxu0 0.0
    %1272 = vmatpush1.msra.mxu0 0.0
    %1273 = vmatprep.subr.mxu0 0.0
    %1274 = vmatpush1.msra.mxu0 0.0
    %1275 = vmatprep.subr.mxu0 0.0
    %1276 = vmatpush1.msra.mxu0 0.0
    %1277 = vmatprep.subr.mxu0 0.0
    %1278 = vmatpush1.msra.mxu0 0.0
    %1279 = vmatprep.subr.mxu0 0.0
    %1280 = vmatpush1.msra.mxu0 0.0
    %1281 = vmatprep.subr.mxu0 0.0
    %1282 = vmatpush1.msra.mxu0 0.0
    %1283 = vmatprep.subr.mxu0 0.0
    %1284 = vmatpush1.msra.mxu0 0.0
    %1285 = vmatprep.subr.mxu0 0.0
    %1286 = vmatpush1.msra.mxu0 0.0
    %1287 = vmatprep.subr.mxu0 0.0
    %1288 = vmatpush1.msra.mxu0 0.0
    %1289 = vmatprep.subr.mxu0 0.0
    %1290 = vmatpush1.msra.mxu0 0.0
    %1291 = vmatprep.subr.mxu0 0.0
    %1292 = vmatpush1.msra.mxu0 0.0
    %1293 = vmatprep.subr.mxu0 0.0
    %1294 = vmatpush1.msra.mxu0 0.0
    %1295 = vmatprep.subr.mxu0 0.0
    %1296 = vmatpush1.msra.mxu0 0.0
    %1297 = vmatprep.subr.mxu0 0.0
    %1298 = vmatpush1.msra.mxu0 0.0
    %1299 = vmatprep.subr.mxu0 0.0
    %1300 = vmatpush1.msra.mxu0 0.0
    %1301 = vmatprep.subr.mxu0 0.0
    %1302 = vmatpush1.msra.mxu0 0.0
    %1303 = vmatprep.mubr.f32.mxu0 0.0
    %1304 = vmatmul.mubr.f32.gmra.mrb[0].mxu0 %v1237
    %v1305 = vpop.f32.mrb[0].mxu0
    %v1306 = vadd.f32 %v718, %v1305
    %v1307 = vpop.f32.mrb[0].mxu0
    %1308 = vdwg.mxu0
    %v1309 = vrot.slane %v164, 6
    %v1310 = vsel %vm106, %v1309, 0
    %1312 = vmatprep.subr.mxu0 0.0
    %1313 = vmatpush1.msra.mxu0 %v722
    %1314 = vmatprep.subr.mxu0 0.0
    %1315 = vmatpush1.msra.mxu0 %v723
    %1316 = vmatprep.subr.mxu0 0.0
    %1317 = vmatpush1.msra.mxu0 0.0
    %1318 = vmatprep.subr.mxu0 0.0
    %1319 = vmatpush1.msra.mxu0 0.0
    %1320 = vmatprep.subr.mxu0 0.0
    %1321 = vmatpush1.msra.mxu0 0.0
    %1322 = vmatprep.subr.mxu0 0.0
    %1323 = vmatpush1.msra.mxu0 0.0
    %1324 = vmatprep.subr.mxu0 0.0
    %1325 = vmatpush1.msra.mxu0 0.0
    %1326 = vmatprep.subr.mxu0 0.0
    %1327 = vmatpush1.msra.mxu0 0.0
    %1328 = vmatprep.subr.mxu0 0.0
    %1329 = vmatpush1.msra.mxu0 0.0
    %1330 = vmatprep.subr.mxu0 0.0
    %1331 = vmatpush1.msra.mxu0 0.0
    %1332 = vmatprep.subr.mxu0 0.0
    %1333 = vmatpush1.msra.mxu0 0.0
    %1334 = vmatprep.subr.mxu0 0.0
    %1335 = vmatpush1.msra.mxu0 0.0
    %1336 = vmatprep.subr.mxu0 0.0
    %1337 = vmatpush1.msra.mxu0 0.0
    %1338 = vmatprep.subr.mxu0 0.0
    %1339 = vmatpush1.msra.mxu0 0.0
    %1340 = vmatprep.subr.mxu0 0.0
    %1341 = vmatpush1.msra.mxu0 0.0
    %1342 = vmatprep.subr.mxu0 0.0
    %1343 = vmatpush1.msra.mxu0 0.0
    %1344 = vmatprep.subr.mxu0 0.0
    %1345 = vmatpush1.msra.mxu0 0.0
    %1346 = vmatprep.subr.mxu0 0.0
    %1347 = vmatpush1.msra.mxu0 0.0
    %1348 = vmatprep.subr.mxu0 0.0
    %1349 = vmatpush1.msra.mxu0 0.0
    %1350 = vmatprep.subr.mxu0 0.0
    %1351 = vmatpush1.msra.mxu0 0.0
    %1352 = vmatprep.subr.mxu0 0.0
    %1353 = vmatpush1.msra.mxu0 0.0
    %1354 = vmatprep.subr.mxu0 0.0
    %1355 = vmatpush1.msra.mxu0 0.0
    %1356 = vmatprep.subr.mxu0 0.0
    %1357 = vmatpush1.msra.mxu0 0.0
    %1358 = vmatprep.subr.mxu0 0.0
    %1359 = vmatpush1.msra.mxu0 0.0
    %1360 = vmatprep.subr.mxu0 0.0
    %1361 = vmatpush1.msra.mxu0 0.0
    %1362 = vmatprep.subr.mxu0 0.0
    %1363 = vmatpush1.msra.mxu0 0.0
    %1364 = vmatprep.subr.mxu0 0.0
    %1365 = vmatpush1.msra.mxu0 0.0
    %1366 = vmatprep.subr.mxu0 0.0
    %1367 = vmatpush1.msra.mxu0 0.0
    %1368 = vmatprep.subr.mxu0 0.0
    %1369 = vmatpush1.msra.mxu0 0.0
    %1370 = vmatprep.subr.mxu0 0.0
    %1371 = vmatpush1.msra.mxu0 0.0
    %1372 = vmatprep.subr.mxu0 0.0
    %1373 = vmatpush1.msra.mxu0 0.0
    %1374 = vmatprep.subr.mxu0 0.0
    %1375 = vmatpush1.msra.mxu0 0.0
    %1376 = vmatprep.mubr.f32.mxu0 0.0
    %1377 = vmatmul.mubr.f32.gmra.mrb[0].mxu0 %v1310
    %v1378 = vpop.f32.mrb[0].mxu0
    %v1379 = vadd.f32 %v797, %v1378
    %v1380 = vpop.f32.mrb[0].mxu0
    %1381 = vdwg.mxu0
    %v1382 = vadd.f32 %v869, %v942
    %v1383 = vadd.f32 %v1015, %v1088
    %v1384 = vadd.f32 %v1160, %v1233
    %v1385 = vadd.f32 %v1306, %v1379
    %v1386 = vadd.f32 %v1382, %v1383
    %v1387 = vadd.f32 %v1384, %v1385
    %v1388 = vadd.f32 %v1386, %v1387
    %v1389 = vld [vmem:[%s2] sm:$0x1]
    %v1390 = vadd.f32 %v1388, %v1389
    %1391 = vst [vmem:[#allocation12] sm:$0x1] %v1390
    // Predicated region
    $region22: #{fwd.1} parent=1 // pred_check
      _
    $region23: #{fwd.1} parent=1 // pred_check_branch
      %1393 = sbr.rel (0) target = $region25
    $region24: #{fwd.1} parent=1 // pred_region
      %s1395 = ssub.s32 256, 256
      %1396 = vsyncadd [#allocation5], %s1395
      %s1397 = sshll.u32 [#allocation8], 4
      %s1398 = int_to_ptr.vmem [resolvable:$true] %s1397
      %1403 = dma.vmem_to_hbm [thread:$0]  %s1398, 256, %s3, [#allocation5], 128, 128, 8
    $region25: #{fwd.1} parent=1 // pred_fallthru
      _
    // Predicated region
    $region26: #{fwd.1} parent=1 // pred_check
      _
    $region27: #{fwd.1} parent=1 // pred_check_branch
      %1405 = sbr.rel (0) target = $region29
    $region28: #{fwd.1} parent=1 // pred_region
      %s1407 = ssub.s32 256, 256
      %1408 = vsyncadd [#allocation10], %s1407
      %s1409 = sshll.u32 [#allocation9], 4
      %s1410 = int_to_ptr.vmem [resolvable:$true] %s1409
      %1415 = dma.vmem_to_hbm [thread:$0]  %s1410, 256, %s4, [#allocation10], 128, 128, 8
    $region29: #{fwd.1} parent=1 // pred_fallthru
      _
    // Predicated region
    $region30: #{fwd.1} parent=1 // pred_check
      _
    $region31: #{fwd.1} parent=1 // pred_check_branch
      %1417 = sbr.rel (0) target = $region33
    $region32: #{fwd.1} parent=1 // pred_region
      %s1419 = ssub.s32 256, 256
      %1420 = vsyncadd [#allocation10], %s1419
      %s1421 = sshll.u32 [#allocation11], 4
      %s1422 = int_to_ptr.vmem [resolvable:$true] %s1421
      %1427 = dma.vmem_to_hbm [thread:$0]  %s1422, 256, %s5, [#allocation10], 128, 128, 8
    $region33: #{fwd.1} parent=1 // pred_fallthru
      _
    // Predicated region
    $region34: #{fwd.1} parent=1 // pred_check
      _
    $region35: #{fwd.1} parent=1 // pred_check_branch
      %1429 = sbr.rel (0) target = $region37
    $region36: #{fwd.1} parent=1 // pred_region
      %s1431 = ssub.s32 16, 16
      %1432 = vsyncadd [#allocation13], %s1431
      %s1434 = sshll.u32 [#allocation12], 4
      %s1435 = int_to_ptr.vmem [resolvable:$true] %s1434
      %1437 = dma.vmem_to_hbm [thread:$0]  %s1435, 16, %s6, [#allocation13]
    $region37: #{fwd.1} parent=1 // pred_fallthru
      _
    // Predicated region
    $region38: #{fwd.1} parent=1 // pred_check
      _
    $region39: #{fwd.1} parent=1 // pred_check_branch
      %1439 = sbr.rel (0) target = $region41
    $region40: #{fwd.1} parent=1 // pred_region
      %1440 = dma.done [#allocation5], 256
    $region41: #{fwd.1} parent=1 // pred_fallthru
      _
    // Predicated region
    $region42: #{fwd.1} parent=1 // pred_check
      _
    $region43: #{fwd.1} parent=1 // pred_check_branch
      %1442 = sbr.rel (0) target = $region45
    $region44: #{fwd.1} parent=1 // pred_region
      %1443 = dma.done [#allocation10], 256
    $region45: #{fwd.1} parent=1 // pred_fallthru
      _
    // Predicated region
    $region46: #{fwd.1} parent=1 // pred_check
      _
    $region47: #{fwd.1} parent=1 // pred_check_branch
      %1445 = sbr.rel (0) target = $region49
    $region48: #{fwd.1} parent=1 // pred_region
      %1446 = dma.done [#allocation10], 256
    $region49: #{fwd.1} parent=1 // pred_fallthru
      _
    // Predicated region
    $region50: #{fwd.1} parent=1 // pred_check
      _
    $region51: #{fwd.1} parent=1 // pred_check_branch
      %1448 = sbr.rel (0) target = $region53
    $region52: #{fwd.1} parent=1 // pred_region
      %1449 = dma.done [#allocation13], 16
    $region53: #{fwd.1} parent=1 // pred_fallthru
      _
    %1450 = vsyncpa [#allocation4], 1
    %1451 = vsyncpa [#allocation7], 1
    %1452 = vsyncpa [#allocation5], 1
    %1453 = vsyncpa [#allocation10], 1
    %1454 = vsyncpa [#allocation13], 1

</llo_original>
